<compile_context>
chip_gen: v5e
topology: v5e:2x2
jax: 0.10.0
libtpu: 0.0.40
codegen_flags: <defaults>
</compile_context>

<pallas_src>
import math
from functools import partial

import jax
import jax.numpy as jnp
from jax.experimental import pallas as pl
from jax.experimental.pallas import tpu as pltpu

_VMEM_LIMIT = 48 * 1024 * 1024  # sized against v7x's 64 MiB physical VMEM


# ----------------------------- Pallas kernels -----------------------------

def _linear_kernel(x_ref, w_ref, b_ref, o_ref):
    x = x_ref[...].astype(jnp.bfloat16)
    w = w_ref[...].astype(jnp.bfloat16)
    y = jnp.dot(x, w, preferred_element_type=jnp.float32) + b_ref[...]
    o_ref[...] = y.astype(o_ref.dtype)


def _ffn_kernel(x_ref, w1_ref, b1_ref, w2_ref, b2_ref, o_ref):
    x = x_ref[...].astype(jnp.bfloat16)
    h = jnp.dot(x, w1_ref[...], preferred_element_type=jnp.float32) + b1_ref[...]
    h = jnp.maximum(h, 0.0)  # relu (f32)
    y = (jnp.dot(h.astype(jnp.bfloat16), w2_ref[...],
                 preferred_element_type=jnp.float32) + b2_ref[...])
    o_ref[...] = y.astype(o_ref.dtype)


def _add_ln_kernel(x_ref, r_ref, g_ref, b_ref, o_ref):
    # LN(x + r) fused: one HBM round trip instead of separate add + LN passes.
    x = x_ref[...].astype(jnp.float32) + r_ref[...].astype(jnp.float32)
    mu = jnp.mean(x, axis=-1, keepdims=True)
    var = jnp.mean(jnp.square(x - mu), axis=-1, keepdims=True)
    xn = (x - mu) * jax.lax.rsqrt(var + 1e-5)
    o_ref[...] = (xn * g_ref[...] + b_ref[...]).astype(o_ref.dtype)


def _attend(q_ref, kv_ref, o_ref, q_off, k_off, v_off, n_heads, d_head, causal, scale):
    # q_ref: (1, Sq, *) ; kv_ref: (1, Sk, *) ; heads packed along the lane dim.
    # TODO(synk): for long sequences convert to a flash-style KV-tiled kernel
    # (running max/sum scratch) instead of the dense (Sq, Sk) score matrix.
    sq = q_ref.shape[1]
    sk = kv_ref.shape[1]
    keep = None
    if causal:
        row = jax.lax.broadcasted_iota(jnp.int32, (sq, sk), 0)
        col = jax.lax.broadcasted_iota(jnp.int32, (sq, sk), 1)
        keep = row >= col
    outs = []
    for h in range(n_heads):
        q = (q_ref[0, :, q_off + h * d_head:q_off + (h + 1) * d_head]
             .astype(jnp.float32) * scale).astype(jnp.bfloat16)
        k = kv_ref[0, :, k_off + h * d_head:k_off + (h + 1) * d_head]
        v = kv_ref[0, :, v_off + h * d_head:v_off + (h + 1) * d_head]
        # contract on the last dim of both q and k (no k.T / XLU transpose)
        s = jax.lax.dot_general(q, k, (((1,), (1,)), ((), ())),
                                preferred_element_type=jnp.float32)
        if causal:
            s = jnp.where(keep, s, -1e9)
        m = jnp.max(s, axis=-1, keepdims=True)
        p = jnp.exp(s - m)
        denom = jnp.sum(p, axis=-1, keepdims=True)
        p = p * pl.reciprocal(denom, approx=True)
        outs.append(jnp.dot(p.astype(jnp.bfloat16), v,
                            preferred_element_type=jnp.float32))
    # one lane-dense (Sq, D) store
    o_ref[0] = jnp.concatenate(outs, axis=-1).astype(o_ref.dtype)


def _self_attn_kernel(qkv_ref, o_ref, *, n_heads, d_head, causal, scale):
    d = n_heads * d_head
    _attend(qkv_ref, qkv_ref, o_ref, 0, d, 2 * d, n_heads, d_head, causal, scale)


def _cross_attn_kernel(q_ref, kv_ref, o_ref, *, n_heads, d_head, scale):
    d = n_heads * d_head
    _attend(q_ref, kv_ref, o_ref, 0, 0, d, n_heads, d_head, False, scale)


# ----------------------------- kernel wrappers -----------------------------

def linear(x2d, w, b, out_dtype=jnp.bfloat16):
    M, K = x2d.shape
    N = w.shape[1]
    tm = M if M <= 256 else 256
    tn = N if N <= 512 else 512
    cost = pl.CostEstimate(
        flops=2 * M * N * K, transcendentals=0,
        bytes_accessed=int(M * K * x2d.dtype.itemsize + K * N * w.dtype.itemsize
                           + M * N * jnp.dtype(out_dtype).itemsize))
    # grid order (N-blocks, M-blocks): M is the fastest axis so the weight block
    # stays resident across the M sweep (matters for the vocab projection).
    return pl.pallas_call(
        _linear_kernel,
        out_shape=jax.ShapeDtypeStruct((M, N), out_dtype),
        grid=(pl.cdiv(N, tn), pl.cdiv(M, tm)),
        in_specs=[pl.BlockSpec((tm, K), lambda j, i: (i, 0)),
                  pl.BlockSpec((K, tn), lambda j, i: (0, j)),
                  pl.BlockSpec((1, tn), lambda j, i: (0, j))],
        out_specs=pl.BlockSpec((tm, tn), lambda j, i: (i, j)),
        compiler_params=pltpu.CompilerParams(
            dimension_semantics=("parallel", "parallel"),
            vmem_limit_bytes=_VMEM_LIMIT),
        cost_estimate=cost,
    )(x2d, w, b)


def feed_forward(x, p):
    B, S, D = x.shape
    M = B * S
    Dff = p["w1"].shape[1]
    tm = M if M <= 256 else 256
    cost = pl.CostEstimate(
        flops=4 * M * D * Dff, transcendentals=0,
        bytes_accessed=int(2 * (M * D * 2 + 2 * D * Dff * 2)))
    out = pl.pallas_call(
        _ffn_kernel,
        out_shape=jax.ShapeDtypeStruct((M, D), jnp.bfloat16),
        grid=(pl.cdiv(M, tm),),
        in_specs=[pl.BlockSpec((tm, D), lambda i: (i, 0)),
                  pl.BlockSpec((D, Dff), lambda i: (0, 0)),
                  pl.BlockSpec((1, Dff), lambda i: (0, 0)),
                  pl.BlockSpec((Dff, D), lambda i: (0, 0)),
                  pl.BlockSpec((1, D), lambda i: (0, 0))],
        out_specs=pl.BlockSpec((tm, D), lambda i: (i, 0)),
        compiler_params=pltpu.CompilerParams(
            dimension_semantics=("parallel",), vmem_limit_bytes=_VMEM_LIMIT),
        cost_estimate=cost,
    )(x.reshape(M, D), p["w1"], p["b1"], p["w2"], p["b2"])
    return out.reshape(B, S, D)


def add_layer_norm(x, r, gamma, beta):
    B, S, D = x.shape
    M = B * S
    tm = M if M <= 512 else 512
    out = pl.pallas_call(
        _add_ln_kernel,
        out_shape=jax.ShapeDtypeStruct((M, D), jnp.bfloat16),
        grid=(pl.cdiv(M, tm),),
        in_specs=[pl.BlockSpec((tm, D), lambda i: (i, 0)),
                  pl.BlockSpec((tm, D), lambda i: (i, 0)),
                  pl.BlockSpec((1, D), lambda i: (0, 0)),
                  pl.BlockSpec((1, D), lambda i: (0, 0))],
        out_specs=pl.BlockSpec((tm, D), lambda i: (i, 0)),
        compiler_params=pltpu.CompilerParams(
            dimension_semantics=("parallel",), vmem_limit_bytes=_VMEM_LIMIT),
    )(x.reshape(M, D), r.reshape(M, D), gamma, beta)
    return out.reshape(B, S, D)


def self_attention(p, x, n_heads, causal):
    B, S, D = x.shape
    Dh = D // n_heads
    qkv = linear(x.reshape(B * S, D), p["wqkv"], p["bqkv"]).reshape(B, S, 3 * D)
    kernel = partial(_self_attn_kernel, n_heads=n_heads, d_head=Dh,
                     causal=causal, scale=1.0 / math.sqrt(Dh))
    o = pl.pallas_call(
        kernel,
        out_shape=jax.ShapeDtypeStruct((B, S, D), jnp.bfloat16),
        grid=(B,),
        in_specs=[pl.BlockSpec((1, S, 3 * D), lambda b: (b, 0, 0))],
        out_specs=pl.BlockSpec((1, S, D), lambda b: (b, 0, 0)),
        compiler_params=pltpu.CompilerParams(
            dimension_semantics=("parallel",), vmem_limit_bytes=_VMEM_LIMIT),
    )(qkv)
    return linear(o.reshape(B * S, D), p["wo"], p["bo"]).reshape(B, S, D)


def cross_attention(p, x_q, x_kv, n_heads):
    B, Sq, D = x_q.shape
    Sk = x_kv.shape[1]
    Dh = D // n_heads
    q = linear(x_q.reshape(B * Sq, D), p["wq"], p["bq"]).reshape(B, Sq, D)
    kv = linear(x_kv.reshape(B * Sk, D), p["wkv"], p["bkv"]).reshape(B, Sk, 2 * D)
    kernel = partial(_cross_attn_kernel, n_heads=n_heads, d_head=Dh,
                     scale=1.0 / math.sqrt(Dh))
    o = pl.pallas_call(
        kernel,
        out_shape=jax.ShapeDtypeStruct((B, Sq, D), jnp.bfloat16),
        grid=(B,),
        in_specs=[pl.BlockSpec((1, Sq, D), lambda b: (b, 0, 0)),
                  pl.BlockSpec((1, Sk, 2 * D), lambda b: (b, 0, 0))],
        out_specs=pl.BlockSpec((1, Sq, D), lambda b: (b, 0, 0)),
        compiler_params=pltpu.CompilerParams(
            dimension_semantics=("parallel",), vmem_limit_bytes=_VMEM_LIMIT),
    )(q, kv)
    return linear(o.reshape(B * Sq, D), p["wo"], p["bo"]).reshape(B, Sq, D)


# ----------------------------- model (glue) -----------------------------

def positional_encoding(seq_len, d_model):
    pos = jnp.arange(seq_len, dtype=jnp.float32)[:, None]
    i = jnp.arange(d_model)[None, :]
    rates = 1.0 / jnp.power(10000.0, (2 * (i // 2)).astype(jnp.float32) / d_model)
    ang = pos * rates
    return jnp.where(i % 2 == 0, jnp.sin(ang), jnp.cos(ang))  # (seq_len, d_model)


def _init_linear_w(key, fan_in, fan_out):
    w = (jax.random.normal(key, (fan_in, fan_out), jnp.float32)
         / math.sqrt(fan_in)).astype(jnp.bfloat16)
    b = jnp.zeros((1, fan_out), jnp.float32)
    return w, b


def _init_self_mha(key, d_model):
    k1, k2 = jax.random.split(key)
    wqkv, bqkv = _init_linear_w(k1, d_model, 3 * d_model)   # fused Q|K|V
    wo, bo = _init_linear_w(k2, d_model, d_model)
    return {"wqkv": wqkv, "bqkv": bqkv, "wo": wo, "bo": bo}


def _init_cross_mha(key, d_model):
    k1, k2, k3 = jax.random.split(key, 3)
    wq, bq = _init_linear_w(k1, d_model, d_model)
    wkv, bkv = _init_linear_w(k2, d_model, 2 * d_model)     # fused K|V
    wo, bo = _init_linear_w(k3, d_model, d_model)
    return {"wq": wq, "bq": bq, "wkv": wkv, "bkv": bkv, "wo": wo, "bo": bo}


def _init_ffn(key, d_model, d_ff):
    k1, k2 = jax.random.split(key)
    w1, b1 = _init_linear_w(k1, d_model, d_ff)
    w2, b2 = _init_linear_w(k2, d_ff, d_model)
    return {"w1": w1, "b1": b1, "w2": w2, "b2": b2}


def init_transformer(key, n_tokens, n_layers, d_model, d_ff):
    keys = jax.random.split(key, 4 + 2 * n_layers)
    params = {
        "enc_emb": 0.02 * jax.random.normal(keys[0], (n_tokens, d_model), jnp.float32),
        "dec_emb": 0.02 * jax.random.normal(keys[1], (n_tokens, d_model), jnp.float32),
    }
    out_w, out_b = _init_linear_w(keys[2], d_model, n_tokens)
    params["out_w"], params["out_b"] = out_w, out_b

    enc_layers, dec_layers = [], []
    for l in range(n_layers):
        ek = jax.random.split(keys[3 + l], 2)
        enc_layers.append({
            "attn": _init_self_mha(ek[0], d_model),
            "ffn": _init_ffn(ek[1], d_model, d_ff),
            "ln1_g": jnp.ones((1, d_model), jnp.float32),
            "ln1_b": jnp.zeros((1, d_model), jnp.float32),
            "ln2_g": jnp.ones((1, d_model), jnp.float32),
            "ln2_b": jnp.zeros((1, d_model), jnp.float32),
        })
        dk = jax.random.split(keys[3 + n_layers + l], 3)
        dec_layers.append({
            "self_attn": _init_self_mha(dk[0], d_model),
            "cross_attn": _init_cross_mha(dk[1], d_model),
            "ffn": _init_ffn(dk[2], d_model, d_ff),
            "ln1_g": jnp.ones((1, d_model), jnp.float32),
            "ln1_b": jnp.zeros((1, d_model), jnp.float32),
            "ln2_g": jnp.ones((1, d_model), jnp.float32),
            "ln2_b": jnp.zeros((1, d_model), jnp.float32),
            "ln3_g": jnp.ones((1, d_model), jnp.float32),
            "ln3_b": jnp.zeros((1, d_model), jnp.float32),
        })
    params["enc_layers"] = enc_layers
    params["dec_layers"] = dec_layers
    return params


def transformer_forward(params, x_tok, y_tok, n_heads):
    B, Sx = x_tok.shape
    Sy = y_tok.shape[1]
    d_model = params["enc_emb"].shape[1]

    # x_lengths / y_lengths are None: the padding mask is all-ones (dropped at
    # compile time) and the decoder mask is pure causal (generated in-kernel).
    # TODO(synk): length-based padding masks (x_lengths/y_lengths given) not implemented.

    pe_x = positional_encoding(Sx, d_model)[None]
    pe_y = positional_encoding(Sy, d_model)[None]

    # ----- Encoder -----
    # TODO(synk): embedding gather stays in plain JAX (no dedicated Pallas gather here).
    h = (params["enc_emb"][x_tok] * math.sqrt(d_model) + pe_x).astype(jnp.bfloat16)
    for lp in params["enc_layers"]:
        a = self_attention(lp["attn"], h, n_heads, causal=False)
        h = add_layer_norm(h, a, lp["ln1_g"], lp["ln1_b"])
        f = feed_forward(h, lp["ffn"])
        h = add_layer_norm(h, f, lp["ln2_g"], lp["ln2_b"])
    enc_out = h

    # ----- Decoder -----
    g = (params["dec_emb"][y_tok] * math.sqrt(d_model) + pe_y).astype(jnp.bfloat16)
    for lp in params["dec_layers"]:
        a = self_attention(lp["self_attn"], g, n_heads, causal=True)
        g = add_layer_norm(g, a, lp["ln1_g"], lp["ln1_b"])
        c = cross_attention(lp["cross_attn"], g, enc_out, n_heads)
        g = add_layer_norm(g, c, lp["ln2_g"], lp["ln2_b"])
        f = feed_forward(g, lp["ffn"])
        g = add_layer_norm(g, f, lp["ln3_g"], lp["ln3_b"])

    logits = linear(g.reshape(B * Sy, d_model), params["out_w"], params["out_b"],
                    out_dtype=jnp.float32)
    return logits.reshape(B, Sy, -1)


# ----------------------------- main -----------------------------

if __name__ == "__main__":
    n_tokens, n_layers, d_model, n_heads, d_ff = 16, 2, 32, 4, 64
    batch, x_ctx, y_ctx = 2, 8, 8

    key = jax.random.PRNGKey(0)
    kp, kx, ky = jax.random.split(key, 3)
    params = init_transformer(kp, n_tokens, n_layers, d_model, d_ff)

    x = jax.random.randint(kx, (batch, x_ctx), 0, n_tokens, dtype=jnp.int32)
    y = jax.random.randint(ky, (batch, y_ctx), 0, n_tokens, dtype=jnp.int32)

    fwd = jax.jit(partial(transformer_forward, n_heads=n_heads))
    out = fwd(params, x, y)
    jax.block_until_ready(out)
    assert out.shape == (batch, y_ctx, n_tokens)
    assert bool(jnp.all(jnp.isfinite(out)))
    print("KERNEL_OK")
</pallas_src>

<mosaic_0001>
module attributes {stable_mosaic.version = 11 : i64} {
  func.func @_linear_kernel(%arg0: i32, %arg1: i32, %arg2: memref<16x32xbf16, #tpu.memory_space<vmem>>, %arg3: memref<32x32xbf16, #tpu.memory_space<vmem>>, %arg4: memref<1x32xf32, #tpu.memory_space<vmem>>, %arg5: memref<16x32xbf16, #tpu.memory_space<vmem>>) attributes {dimension_semantics = [#tpu.dimension_semantics<parallel>, #tpu.dimension_semantics<parallel>], iteration_bounds = array<i64: 1, 1>, scalar_prefetch = 0 : i64, scratch_operands = 0 : i64, tpu.core_type = #tpu.core_type<tc>, window_params = [{transform_indices = @transform_0, window_bounds = array<i64: 16, 32>}, {transform_indices = @transform_1, window_bounds = array<i64: 32, 32>}, {transform_indices = @transform_2, window_bounds = array<i64: 1, 32>}, {transform_indices = @transform_3, window_bounds = array<i64: 16, 32>}]} {
    %c0 = arith.constant 0 : index
    %c0_0 = arith.constant 0 : index
    %0 = vector.load %arg2[%c0, %c0_0] : memref<16x32xbf16, #tpu.memory_space<vmem>>, vector<16x32xbf16>
    %c0_1 = arith.constant 0 : index
    %c0_2 = arith.constant 0 : index
    %1 = vector.load %arg3[%c0_1, %c0_2] : memref<32x32xbf16, #tpu.memory_space<vmem>>, vector<32x32xbf16>
    %cst = arith.constant dense<0.000000e+00> : vector<16x32xf32>
    %2 = tpu.matmul %0, %1, %cst {dimension_numbers = #tpu.dot_dimension_numbers<[1], [0], [0], [1], [0, 0, 1, 1], [], []>} : vector<16x32xbf16>, vector<32x32xbf16>, vector<16x32xf32> -> vector<16x32xf32>
    %c0_3 = arith.constant 0 : index
    %c0_4 = arith.constant 0 : index
    %3 = vector.load %arg4[%c0_3, %c0_4] : memref<1x32xf32, #tpu.memory_space<vmem>>, vector<1x32xf32>
    %4 = vector.broadcast %3 : vector<1x32xf32> to vector<16x32xf32>
    %5 = arith.addf %2, %4 : vector<16x32xf32>
    %6 = arith.truncf %5 : vector<16x32xf32> to vector<16x32xbf16>
    %c0_5 = arith.constant 0 : index
    %c0_6 = arith.constant 0 : index
    %7 = vector.load %arg5[%c0_5, %c0_6] : memref<16x32xbf16, #tpu.memory_space<vmem>>, vector<16x32xbf16>
    tpu.vector_store %arg5[%c0_5, %c0_6], %6 {strides = array<i32>} : memref<16x32xbf16, #tpu.memory_space<vmem>>, vector<16x32xbf16>,
    return
  }
  func.func @transform_0(%arg0: i32, %arg1: i32) -> (i32, i32) {
    %c0_i32 = arith.constant 0 : i32
    %c0_i32_0 = arith.constant 0 : i32
    return %arg1, %c0_i32 : i32, i32
  }
  func.func @transform_1(%arg0: i32, %arg1: i32) -> (i32, i32) {
    %c0_i32 = arith.constant 0 : i32
    %c0_i32_0 = arith.constant 0 : i32
    return %c0_i32, %arg0 : i32, i32
  }
  func.func @transform_2(%arg0: i32, %arg1: i32) -> (i32, i32) {
    %c0_i32 = arith.constant 0 : i32
    %c0_i32_0 = arith.constant 0 : i32
    return %c0_i32, %arg0 : i32, i32
  }
  func.func @transform_3(%arg0: i32, %arg1: i32) -> (i32, i32) {
    %c0_i32 = arith.constant 0 : i32
    return %arg1, %arg0 : i32, i32
  }
}

module attributes {stable_mosaic.version = 11 : i64} {
  func.func @_add_ln_kernel(%arg0: i32, %arg1: memref<16x32xbf16, #tpu.memory_space<vmem>>, %arg2: memref<16x32xbf16, #tpu.memory_space<vmem>>, %arg3: memref<1x32xf32, #tpu.memory_space<vmem>>, %arg4: memref<1x32xf32, #tpu.memory_space<vmem>>, %arg5: memref<16x32xbf16, #tpu.memory_space<vmem>>) attributes {dimension_semantics = [#tpu.dimension_semantics<parallel>], iteration_bounds = array<i64: 1>, scalar_prefetch = 0 : i64, scratch_operands = 0 : i64, tpu.core_type = #tpu.core_type<tc>, window_params = [{transform_indices = @transform_0, window_bounds = array<i64: 16, 32>}, {transform_indices = @transform_1, window_bounds = array<i64: 16, 32>}, {pipeline_mode = #tpu.pipeline_mode<synchronous>, transform_indices = @transform_2, window_bounds = array<i64: 1, 32>}, {pipeline_mode = #tpu.pipeline_mode<synchronous>, transform_indices = @transform_3, window_bounds = array<i64: 1, 32>}, {transform_indices = @transform_4, window_bounds = array<i64: 16, 32>}]} {
    %c0 = arith.constant 0 : index
    %c0_0 = arith.constant 0 : index
    %0 = vector.load %arg1[%c0, %c0_0] : memref<16x32xbf16, #tpu.memory_space<vmem>>, vector<16x32xbf16>
    %1 = arith.extf %0 : vector<16x32xbf16> to vector<16x32xf32>
    %c0_1 = arith.constant 0 : index
    %c0_2 = arith.constant 0 : index
    %2 = vector.load %arg2[%c0_1, %c0_2] : memref<16x32xbf16, #tpu.memory_space<vmem>>, vector<16x32xbf16>
    %3 = arith.extf %2 : vector<16x32xbf16> to vector<16x32xf32>
    %4 = arith.addf %1, %3 : vector<16x32xf32>
    %cst = arith.constant dense<0.000000e+00> : vector<16xf32>
    %5 = vector.multi_reduction <add>, %4, %cst [1] : vector<16x32xf32> to vector<16xf32>
    %6 = vector.shape_cast %5 : vector<16xf32> to vector<16x1xf32>
    %cst_3 = arith.constant 3.200000e+01 : f32
    %7 = vector.broadcast %cst_3 : f32 to vector<16x1xf32>
    %8 = arith.divf %6, %7 : vector<16x1xf32>
    %9 = vector.broadcast %8 : vector<16x1xf32> to vector<16x32xf32>
    %10 = arith.subf %4, %9 : vector<16x32xf32>
    %11 = arith.mulf %10, %10 : vector<16x32xf32>
    %cst_4 = arith.constant dense<0.000000e+00> : vector<16xf32>
    %12 = vector.multi_reduction <add>, %11, %cst_4 [1] : vector<16x32xf32> to vector<16xf32>
    %13 = vector.shape_cast %12 : vector<16xf32> to vector<16x1xf32>
    %cst_5 = arith.constant 3.200000e+01 : f32
    %14 = vector.broadcast %cst_5 : f32 to vector<16x1xf32>
    %15 = arith.divf %13, %14 : vector<16x1xf32>
    %16 = vector.broadcast %8 : vector<16x1xf32> to vector<16x32xf32>
    %17 = arith.subf %4, %16 : vector<16x32xf32>
    %cst_6 = arith.constant 9.99999974E-6 : f32
    %18 = vector.broadcast %cst_6 : f32 to vector<16x1xf32>
    %19 = arith.addf %15, %18 : vector<16x1xf32>
    %20 = math.rsqrt %19 : vector<16x1xf32>
    %21 = vector.broadcast %20 : vector<16x1xf32> to vector<16x32xf32>
    %22 = arith.mulf %17, %21 : vector<16x32xf32>
    %c0_7 = arith.constant 0 : index
    %c0_8 = arith.constant 0 : index
    %23 = vector.load %arg3[%c0_7, %c0_8] : memref<1x32xf32, #tpu.memory_space<vmem>>, vector<1x32xf32>
    %24 = vector.broadcast %23 : vector<1x32xf32> to vector<16x32xf32>
    %25 = arith.mulf %22, %24 : vector<16x32xf32>
    %c0_9 = arith.constant 0 : index
    %c0_10 = arith.constant 0 : index
    %26 = vector.load %arg4[%c0_9, %c0_10] : memref<1x32xf32, #tpu.memory_space<vmem>>, vector<1x32xf32>
    %27 = vector.broadcast %26 : vector<1x32xf32> to vector<16x32xf32>
    %28 = arith.addf %25, %27 : vector<16x32xf32>
    %29 = arith.truncf %28 : vector<16x32xf32> to vector<16x32xbf16>
    %c0_11 = arith.constant 0 : index
    %c0_12 = arith.constant 0 : index
    %30 = vector.load %arg5[%c0_11, %c0_12] : memref<16x32xbf16, #tpu.memory_space<vmem>>, vector<16x32xbf16>
    tpu.vector_store %arg5[%c0_11, %c0_12], %29 {strides = array<i32>} : memref<16x32xbf16, #tpu.memory_space<vmem>>, vector<16x32xbf16>,
    return
  }
  func.func @transform_0(%arg0: i32) -> (i32, i32) {
    %c0_i32 = arith.constant 0 : i32
    %c0_i32_0 = arith.constant 0 : i32
    return %arg0, %c0_i32 : i32, i32
  }
  func.func @transform_1(%arg0: i32) -> (i32, i32) {
    %c0_i32 = arith.constant 0 : i32
    %c0_i32_0 = arith.constant 0 : i32
    return %arg0, %c0_i32 : i32, i32
  }
  func.func @transform_2(%arg0: i32) -> (i32, i32) {
    %c0_i32 = arith.constant 0 : i32
    %c0_i32_0 = arith.constant 0 : i32
    %c0_i32_1 = arith.constant 0 : i32
    return %c0_i32, %c0_i32_0 : i32, i32
  }
  func.func @transform_3(%arg0: i32) -> (i32, i32) {
    %c0_i32 = arith.constant 0 : i32
    %c0_i32_0 = arith.constant 0 : i32
    %c0_i32_1 = arith.constant 0 : i32
    return %c0_i32, %c0_i32_0 : i32, i32
  }
  func.func @transform_4(%arg0: i32) -> (i32, i32) {
    %c0_i32 = arith.constant 0 : i32
    %c0_i32_0 = arith.constant 0 : i32
    return %arg0, %c0_i32 : i32, i32
  }
}

module attributes {stable_mosaic.version = 11 : i64} {
  func.func @_linear_kernel(%arg0: i32, %arg1: i32, %arg2: memref<16x32xbf16, #tpu.memory_space<vmem>>, %arg3: memref<32x96xbf16, #tpu.memory_space<vmem>>, %arg4: memref<1x96xf32, #tpu.memory_space<vmem>>, %arg5: memref<16x96xbf16, #tpu.memory_space<vmem>>) attributes {dimension_semantics = [#tpu.dimension_semantics<parallel>, #tpu.dimension_semantics<parallel>], iteration_bounds = array<i64: 1, 1>, scalar_prefetch = 0 : i64, scratch_operands = 0 : i64, tpu.core_type = #tpu.core_type<tc>, window_params = [{transform_indices = @transform_0, window_bounds = array<i64: 16, 32>}, {transform_indices = @transform_1, window_bounds = array<i64: 32, 96>}, {transform_indices = @transform_2, window_bounds = array<i64: 1, 96>}, {transform_indices = @transform_3, window_bounds = array<i64: 16, 96>}]} {
    %c0 = arith.constant 0 : index
    %c0_0 = arith.constant 0 : index
    %0 = vector.load %arg2[%c0, %c0_0] : memref<16x32xbf16, #tpu.memory_space<vmem>>, vector<16x32xbf16>
    %c0_1 = arith.constant 0 : index
    %c0_2 = arith.constant 0 : index
    %1 = vector.load %arg3[%c0_1, %c0_2] : memref<32x96xbf16, #tpu.memory_space<vmem>>, vector<32x96xbf16>
    %cst = arith.constant dense<0.000000e+00> : vector<16x96xf32>
    %2 = tpu.matmul %0, %1, %cst {dimension_numbers = #tpu.dot_dimension_numbers<[1], [0], [0], [1], [0, 0, 1, 1], [], []>} : vector<16x32xbf16>, vector<32x96xbf16>, vector<16x96xf32> -> vector<16x96xf32>
    %c0_3 = arith.constant 0 : index
    %c0_4 = arith.constant 0 : index
    %3 = vector.load %arg4[%c0_3, %c0_4] : memref<1x96xf32, #tpu.memory_space<vmem>>, vector<1x96xf32>
    %4 = vector.broadcast %3 : vector<1x96xf32> to vector<16x96xf32>
    %5 = arith.addf %2, %4 : vector<16x96xf32>
    %6 = arith.truncf %5 : vector<16x96xf32> to vector<16x96xbf16>
    %c0_5 = arith.constant 0 : index
    %c0_6 = arith.constant 0 : index
    %7 = vector.load %arg5[%c0_5, %c0_6] : memref<16x96xbf16, #tpu.memory_space<vmem>>, vector<16x96xbf16>
    tpu.vector_store %arg5[%c0_5, %c0_6], %6 {strides = array<i32>} : memref<16x96xbf16, #tpu.memory_space<vmem>>, vector<16x96xbf16>,
    return
  }
  func.func @transform_0(%arg0: i32, %arg1: i32) -> (i32, i32) {
    %c0_i32 = arith.constant 0 : i32
    %c0_i32_0 = arith.constant 0 : i32
    return %arg1, %c0_i32 : i32, i32
  }
  func.func @transform_1(%arg0: i32, %arg1: i32) -> (i32, i32) {
    %c0_i32 = arith.constant 0 : i32
    %c0_i32_0 = arith.constant 0 : i32
    return %c0_i32, %arg0 : i32, i32
  }
  func.func @transform_2(%arg0: i32, %arg1: i32) -> (i32, i32) {
    %c0_i32 = arith.constant 0 : i32
    %c0_i32_0 = arith.constant 0 : i32
    return %c0_i32, %arg0 : i32, i32
  }
  func.func @transform_3(%arg0: i32, %arg1: i32) -> (i32, i32) {
    %c0_i32 = arith.constant 0 : i32
    return %arg1, %arg0 : i32, i32
  }
}

module attributes {stable_mosaic.version = 11 : i64} {
  func.func @_self_attn_kernel(%arg0: i32, %arg1: memref<1x8x96xbf16, #tpu.memory_space<vmem>>, %arg2: memref<1x8x32xbf16, #tpu.memory_space<vmem>>) attributes {dimension_semantics = [#tpu.dimension_semantics<parallel>], iteration_bounds = array<i64: 2>, scalar_prefetch = 0 : i64, scratch_operands = 0 : i64, tpu.core_type = #tpu.core_type<tc>, window_params = [{transform_indices = @transform_0, window_bounds = array<i64: 1, 8, 96>}, {transform_indices = @transform_1, window_bounds = array<i64: 1, 8, 32>}]} {
    %c0 = arith.constant 0 : index
    %c0_0 = arith.constant 0 : index
    %c0_1 = arith.constant 0 : index
    %0 = vector.load %arg1[%c0, %c0_0, %c0_1] : memref<1x8x96xbf16, #tpu.memory_space<vmem>>, vector<1x8x8xbf16>
    %1 = vector.shape_cast %0 : vector<1x8x8xbf16> to vector<8x8xbf16>
    %2 = arith.extf %1 : vector<8x8xbf16> to vector<8x8xf32>
    %cst = arith.constant 0.353553385 : f32
    %3 = vector.broadcast %cst : f32 to vector<8x8xf32>
    %4 = arith.mulf %2, %3 : vector<8x8xf32>
    %5 = arith.truncf %4 : vector<8x8xf32> to vector<8x8xbf16>
    %c0_2 = arith.constant 0 : index
    %c0_3 = arith.constant 0 : index
    %c32 = arith.constant 32 : index
    %6 = vector.load %arg1[%c0_2, %c0_3, %c32] : memref<1x8x96xbf16, #tpu.memory_space<vmem>>, vector<1x8x8xbf16>
    %7 = vector.shape_cast %6 : vector<1x8x8xbf16> to vector<8x8xbf16>
    %c0_4 = arith.constant 0 : index
    %c0_5 = arith.constant 0 : index
    %c64 = arith.constant 64 : index
    %8 = vector.load %arg1[%c0_4, %c0_5, %c64] : memref<1x8x96xbf16, #tpu.memory_space<vmem>>, vector<1x8x8xbf16>
    %9 = vector.shape_cast %8 : vector<1x8x8xbf16> to vector<8x8xbf16>
    %cst_6 = arith.constant dense<0.000000e+00> : vector<8x8xf32>
    %10 = tpu.matmul %5, %7, %cst_6 {dimension_numbers = #tpu.dot_dimension_numbers<[1], [1], [0], [0], [0, 0, 1, 0], [], []>} : vector<8x8xbf16>, vector<8x8xbf16>, vector<8x8xf32> -> vector<8x8xf32>
    %cst_7 = arith.constant dense<0xFF800000> : vector<8xf32>
    %11 = vector.multi_reduction <maximumf>, %10, %cst_7 [1] : vector<8x8xf32> to vector<8xf32>
    %12 = vector.shape_cast %11 : vector<8xf32> to vector<8x1xf32>
    %13 = vector.broadcast %12 : vector<8x1xf32> to vector<8x8xf32>
    %14 = arith.subf %10, %13 : vector<8x8xf32>
    %15 = math.exp %14 : vector<8x8xf32>
    %cst_8 = arith.constant dense<0.000000e+00> : vector<8xf32>
    %16 = vector.multi_reduction <add>, %15, %cst_8 [1] : vector<8x8xf32> to vector<8xf32>
    %17 = vector.shape_cast %16 : vector<8xf32> to vector<8x1xf32>
    %18 = tpu.reciprocal %17 {approx = true} : vector<8x1xf32> -> vector<8x1xf32>
    %19 = vector.broadcast %18 : vector<8x1xf32> to vector<8x8xf32>
    %20 = arith.mulf %15, %19 : vector<8x8xf32>
    %21 = arith.truncf %20 : vector<8x8xf32> to vector<8x8xbf16>
    %cst_9 = arith.constant dense<0.000000e+00> : vector<8x8xf32>
    %22 = tpu.matmul %21, %9, %cst_9 {dimension_numbers = #tpu.dot_dimension_numbers<[1], [0], [0], [1], [0, 0, 1, 1], [], []>} : vector<8x8xbf16>, vector<8x8xbf16>, vector<8x8xf32> -> vector<8x8xf32>
    %c0_10 = arith.constant 0 : index
    %c0_11 = arith.constant 0 : index
    %c8 = arith.constant 8 : index
    %23 = vector.load %arg1[%c0_10, %c0_11, %c8] : memref<1x8x96xbf16, #tpu.memory_space<vmem>>, vector<1x8x8xbf16>
    %24 = vector.shape_cast %23 : vector<1x8x8xbf16> to vector<8x8xbf16>
    %25 = arith.extf %24 : vector<8x8xbf16> to vector<8x8xf32>
    %cst_12 = arith.constant 0.353553385 : f32
    %26 = vector.broadcast %cst_12 : f32 to vector<8x8xf32>
    %27 = arith.mulf %25, %26 : vector<8x8xf32>
    %28 = arith.truncf %27 : vector<8x8xf32> to vector<8x8xbf16>
    %c0_13 = arith.constant 0 : index
    %c0_14 = arith.constant 0 : index
    %c40 = arith.constant 40 : index
    %29 = vector.load %arg1[%c0_13, %c0_14, %c40] : memref<1x8x96xbf16, #tpu.memory_space<vmem>>, vector<1x8x8xbf16>
    %30 = vector.shape_cast %29 : vector<1x8x8xbf16> to vector<8x8xbf16>
    %c0_15 = arith.constant 0 : index
    %c0_16 = arith.constant 0 : index
    %c72 = arith.constant 72 : index
    %31 = vector.load %arg1[%c0_15, %c0_16, %c72] : memref<1x8x96xbf16, #tpu.memory_space<vmem>>, vector<1x8x8xbf16>
    %32 = vector.shape_cast %31 : vector<1x8x8xbf16> to vector<8x8xbf16>
    %cst_17 = arith.constant dense<0.000000e+00> : vector<8x8xf32>
    %33 = tpu.matmul %28, %30, %cst_17 {dimension_numbers = #tpu.dot_dimension_numbers<[1], [1], [0], [0], [0, 0, 1, 0], [], []>} : vector<8x8xbf16>, vector<8x8xbf16>, vector<8x8xf32> -> vector<8x8xf32>
    %cst_18 = arith.constant dense<0xFF800000> : vector<8xf32>
    %34 = vector.multi_reduction <maximumf>, %33, %cst_18 [1] : vector<8x8xf32> to vector<8xf32>
    %35 = vector.shape_cast %34 : vector<8xf32> to vector<8x1xf32>
    %36 = vector.broadcast %35 : vector<8x1xf32> to vector<8x8xf32>
    %37 = arith.subf %33, %36 : vector<8x8xf32>
    %38 = math.exp %37 : vector<8x8xf32>
    %cst_19 = arith.constant dense<0.000000e+00> : vector<8xf32>
    %39 = vector.multi_reduction <add>, %38, %cst_19 [1] : vector<8x8xf32> to vector<8xf32>
    %40 = vector.shape_cast %39 : vector<8xf32> to vector<8x1xf32>
    %41 = tpu.reciprocal %40 {approx = true} : vector<8x1xf32> -> vector<8x1xf32>
    %42 = vector.broadcast %41 : vector<8x1xf32> to vector<8x8xf32>
    %43 = arith.mulf %38, %42 : vector<8x8xf32>
    %44 = arith.truncf %43 : vector<8x8xf32> to vector<8x8xbf16>
    %cst_20 = arith.constant dense<0.000000e+00> : vector<8x8xf32>
    %45 = tpu.matmul %44, %32, %cst_20 {dimension_numbers = #tpu.dot_dimension_numbers<[1], [0], [0], [1], [0, 0, 1, 1], [], []>} : vector<8x8xbf16>, vector<8x8xbf16>, vector<8x8xf32> -> vector<8x8xf32>
    %c0_21 = arith.constant 0 : index
    %c0_22 = arith.constant 0 : index
    %c16 = arith.constant 16 : index
    %46 = vector.load %arg1[%c0_21, %c0_22, %c16] : memref<1x8x96xbf16, #tpu.memory_space<vmem>>, vector<1x8x8xbf16>
    %47 = vector.shape_cast %46 : vector<1x8x8xbf16> to vector<8x8xbf16>
    %48 = arith.extf %47 : vector<8x8xbf16> to vector<8x8xf32>
    %cst_23 = arith.constant 0.353553385 : f32
    %49 = vector.broadcast %cst_23 : f32 to vector<8x8xf32>
    %50 = arith.mulf %48, %49 : vector<8x8xf32>
    %51 = arith.truncf %50 : vector<8x8xf32> to vector<8x8xbf16>
    %c0_24 = arith.constant 0 : index
    %c0_25 = arith.constant 0 : index
    %c48 = arith.constant 48 : index
    %52 = vector.load %arg1[%c0_24, %c0_25, %c48] : memref<1x8x96xbf16, #tpu.memory_space<vmem>>, vector<1x8x8xbf16>
    %53 = vector.shape_cast %52 : vector<1x8x8xbf16> to vector<8x8xbf16>
    %c0_26 = arith.constant 0 : index
    %c0_27 = arith.constant 0 : index
    %c80 = arith.constant 80 : index
    %54 = vector.load %arg1[%c0_26, %c0_27, %c80] : memref<1x8x96xbf16, #tpu.memory_space<vmem>>, vector<1x8x8xbf16>
    %55 = vector.shape_cast %54 : vector<1x8x8xbf16> to vector<8x8xbf16>
    %cst_28 = arith.constant dense<0.000000e+00> : vector<8x8xf32>
    %56 = tpu.matmul %51, %53, %cst_28 {dimension_numbers = #tpu.dot_dimension_numbers<[1], [1], [0], [0], [0, 0, 1, 0], [], []>} : vector<8x8xbf16>, vector<8x8xbf16>, vector<8x8xf32> -> vector<8x8xf32>
    %cst_29 = arith.constant dense<0xFF800000> : vector<8xf32>
    %57 = vector.multi_reduction <maximumf>, %56, %cst_29 [1] : vector<8x8xf32> to vector<8xf32>
    %58 = vector.shape_cast %57 : vector<8xf32> to vector<8x1xf32>
    %59 = vector.broadcast %58 : vector<8x1xf32> to vector<8x8xf32>
    %60 = arith.subf %56, %59 : vector<8x8xf32>
    %61 = math.exp %60 : vector<8x8xf32>
    %cst_30 = arith.constant dense<0.000000e+00> : vector<8xf32>
    %62 = vector.multi_reduction <add>, %61, %cst_30 [1] : vector<8x8xf32> to vector<8xf32>
    %63 = vector.shape_cast %62 : vector<8xf32> to vector<8x1xf32>
    %64 = tpu.reciprocal %63 {approx = true} : vector<8x1xf32> -> vector<8x1xf32>
    %65 = vector.broadcast %64 : vector<8x1xf32> to vector<8x8xf32>
    %66 = arith.mulf %61, %65 : vector<8x8xf32>
    %67 = arith.truncf %66 : vector<8x8xf32> to vector<8x8xbf16>
    %cst_31 = arith.constant dense<0.000000e+00> : vector<8x8xf32>
    %68 = tpu.matmul %67, %55, %cst_31 {dimension_numbers = #tpu.dot_dimension_numbers<[1], [0], [0], [1], [0, 0, 1, 1], [], []>} : vector<8x8xbf16>, vector<8x8xbf16>, vector<8x8xf32> -> vector<8x8xf32>
    %c0_32 = arith.constant 0 : index
    %c0_33 = arith.constant 0 : index
    %c24 = arith.constant 24 : index
    %69 = vector.load %arg1[%c0_32, %c0_33, %c24] : memref<1x8x96xbf16, #tpu.memory_space<vmem>>, vector<1x8x8xbf16>
    %70 = vector.shape_cast %69 : vector<1x8x8xbf16> to vector<8x8xbf16>
    %71 = arith.extf %70 : vector<8x8xbf16> to vector<8x8xf32>
    %cst_34 = arith.constant 0.353553385 : f32
    %72 = vector.broadcast %cst_34 : f32 to vector<8x8xf32>
    %73 = arith.mulf %71, %72 : vector<8x8xf32>
    %74 = arith.truncf %73 : vector<8x8xf32> to vector<8x8xbf16>
    %c0_35 = arith.constant 0 : index
    %c0_36 = arith.constant 0 : index
    %c56 = arith.constant 56 : index
    %75 = vector.load %arg1[%c0_35, %c0_36, %c56] : memref<1x8x96xbf16, #tpu.memory_space<vmem>>, vector<1x8x8xbf16>
    %76 = vector.shape_cast %75 : vector<1x8x8xbf16> to vector<8x8xbf16>
    %c0_37 = arith.constant 0 : index
    %c0_38 = arith.constant 0 : index
    %c88 = arith.constant 88 : index
    %77 = vector.load %arg1[%c0_37, %c0_38, %c88] : memref<1x8x96xbf16, #tpu.memory_space<vmem>>, vector<1x8x8xbf16>
    %78 = vector.shape_cast %77 : vector<1x8x8xbf16> to vector<8x8xbf16>
    %cst_39 = arith.constant dense<0.000000e+00> : vector<8x8xf32>
    %79 = tpu.matmul %74, %76, %cst_39 {dimension_numbers = #tpu.dot_dimension_numbers<[1], [1], [0], [0], [0, 0, 1, 0], [], []>} : vector<8x8xbf16>, vector<8x8xbf16>, vector<8x8xf32> -> vector<8x8xf32>
    %cst_40 = arith.constant dense<0xFF800000> : vector<8xf32>
    %80 = vector.multi_reduction <maximumf>, %79, %cst_40 [1] : vector<8x8xf32> to vector<8xf32>
    %81 = vector.shape_cast %80 : vector<8xf32> to vector<8x1xf32>
    %82 = vector.broadcast %81 : vector<8x1xf32> to vector<8x8xf32>
    %83 = arith.subf %79, %82 : vector<8x8xf32>
    %84 = math.exp %83 : vector<8x8xf32>
    %cst_41 = arith.constant dense<0.000000e+00> : vector<8xf32>
    %85 = vector.multi_reduction <add>, %84, %cst_41 [1] : vector<8x8xf32> to vector<8xf32>
    %86 = vector.shape_cast %85 : vector<8xf32> to vector<8x1xf32>
    %87 = tpu.reciprocal %86 {approx = true} : vector<8x1xf32> -> vector<8x1xf32>
    %88 = vector.broadcast %87 : vector<8x1xf32> to vector<8x8xf32>
    %89 = arith.mulf %84, %88 : vector<8x8xf32>
    %90 = arith.truncf %89 : vector<8x8xf32> to vector<8x8xbf16>
    %cst_42 = arith.constant dense<0.000000e+00> : vector<8x8xf32>
    %91 = tpu.matmul %90, %78, %cst_42 {dimension_numbers = #tpu.dot_dimension_numbers<[1], [0], [0], [1], [0, 0, 1, 1], [], []>} : vector<8x8xbf16>, vector<8x8xbf16>, vector<8x8xf32> -> vector<8x8xf32>
    %92 = tpu.concatenate %22, %45, %68, %91 in 1 : vector<8x8xf32>, vector<8x8xf32>, vector<8x8xf32>, vector<8x8xf32> -> vector<8x32xf32>
    %93 = arith.truncf %92 : vector<8x32xf32> to vector<8x32xbf16>
    %c0_43 = arith.constant 0 : index
    %c0_44 = arith.constant 0 : index
    %c0_45 = arith.constant 0 : index
    %94 = vector.load %arg2[%c0_43, %c0_44, %c0_45] : memref<1x8x32xbf16, #tpu.memory_space<vmem>>, vector<1x8x32xbf16>
    %95 = vector.shape_cast %94 : vector<1x8x32xbf16> to vector<8x32xbf16>
    %96 = vector.shape_cast %93 : vector<8x32xbf16> to vector<1x8x32xbf16>
    tpu.vector_store %arg2[%c0_43, %c0_44, %c0_45], %96 {strides = array<i32>} : memref<1x8x32xbf16, #tpu.memory_space<vmem>>, vector<1x8x32xbf16>,
    return
  }
  func.func @transform_0(%arg0: i32) -> (i32, i32, i32) {
    %c0_i32 = arith.constant 0 : i32
    %c0_i32_0 = arith.constant 0 : i32
    %c0_i32_1 = arith.constant 0 : i32
    return %arg0, %c0_i32, %c0_i32_0 : i32, i32, i32
  }
  func.func @transform_1(%arg0: i32) -> (i32, i32, i32) {
    %c0_i32 = arith.constant 0 : i32
    %c0_i32_0 = arith.constant 0 : i32
    %c0_i32_1 = arith.constant 0 : i32
    return %arg0, %c0_i32, %c0_i32_0 : i32, i32, i32
  }
}

module attributes {stable_mosaic.version = 11 : i64} {
  func.func @_ffn_kernel(%arg0: i32, %arg1: memref<16x32xbf16, #tpu.memory_space<vmem>>, %arg2: memref<32x64xbf16, #tpu.memory_space<vmem>>, %arg3: memref<1x64xf32, #tpu.memory_space<vmem>>, %arg4: memref<64x32xbf16, #tpu.memory_space<vmem>>, %arg5: memref<1x32xf32, #tpu.memory_space<vmem>>, %arg6: memref<16x32xbf16, #tpu.memory_space<vmem>>) attributes {dimension_semantics = [#tpu.dimension_semantics<parallel>], iteration_bounds = array<i64: 1>, scalar_prefetch = 0 : i64, scratch_operands = 0 : i64, tpu.core_type = #tpu.core_type<tc>, window_params = [{transform_indices = @transform_0, window_bounds = array<i64: 16, 32>}, {pipeline_mode = #tpu.pipeline_mode<synchronous>, transform_indices = @transform_1, window_bounds = array<i64: 32, 64>}, {pipeline_mode = #tpu.pipeline_mode<synchronous>, transform_indices = @transform_2, window_bounds = array<i64: 1, 64>}, {pipeline_mode = #tpu.pipeline_mode<synchronous>, transform_indices = @transform_3, window_bounds = array<i64: 64, 32>}, {pipeline_mode = #tpu.pipeline_mode<synchronous>, transform_indices = @transform_4, window_bounds = array<i64: 1, 32>}, {transform_indices = @transform_5, window_bounds = array<i64: 16, 32>}]} {
    %c0 = arith.constant 0 : index
    %c0_0 = arith.constant 0 : index
    %0 = vector.load %arg1[%c0, %c0_0] : memref<16x32xbf16, #tpu.memory_space<vmem>>, vector<16x32xbf16>
    %c0_1 = arith.constant 0 : index
    %c0_2 = arith.constant 0 : index
    %1 = vector.load %arg2[%c0_1, %c0_2] : memref<32x64xbf16, #tpu.memory_space<vmem>>, vector<32x64xbf16>
    %cst = arith.constant dense<0.000000e+00> : vector<16x64xf32>
    %2 = tpu.matmul %0, %1, %cst {dimension_numbers = #tpu.dot_dimension_numbers<[1], [0], [0], [1], [0, 0, 1, 1], [], []>} : vector<16x32xbf16>, vector<32x64xbf16>, vector<16x64xf32> -> vector<16x64xf32>
    %c0_3 = arith.constant 0 : index
    %c0_4 = arith.constant 0 : index
    %3 = vector.load %arg3[%c0_3, %c0_4] : memref<1x64xf32, #tpu.memory_space<vmem>>, vector<1x64xf32>
    %4 = vector.broadcast %3 : vector<1x64xf32> to vector<16x64xf32>
    %5 = arith.addf %2, %4 : vector<16x64xf32>
    %cst_5 = arith.constant 0.000000e+00 : f32
    %6 = vector.broadcast %cst_5 : f32 to vector<16x64xf32>
    %7 = arith.maximumf %5, %6 : vector<16x64xf32>
    %8 = arith.truncf %7 : vector<16x64xf32> to vector<16x64xbf16>
    %c0_6 = arith.constant 0 : index
    %c0_7 = arith.constant 0 : index
    %9 = vector.load %arg4[%c0_6, %c0_7] : memref<64x32xbf16, #tpu.memory_space<vmem>>, vector<64x32xbf16>
    %cst_8 = arith.constant dense<0.000000e+00> : vector<16x32xf32>
    %10 = tpu.matmul %8, %9, %cst_8 {dimension_numbers = #tpu.dot_dimension_numbers<[1], [0], [0], [1], [0, 0, 1, 1], [], []>} : vector<16x64xbf16>, vector<64x32xbf16>, vector<16x32xf32> -> vector<16x32xf32>
    %c0_9 = arith.constant 0 : index
    %c0_10 = arith.constant 0 : index
    %11 = vector.load %arg5[%c0_9, %c0_10] : memref<1x32xf32, #tpu.memory_space<vmem>>, vector<1x32xf32>
    %12 = vector.broadcast %11 : vector<1x32xf32> to vector<16x32xf32>
    %13 = arith.addf %10, %12 : vector<16x32xf32>
    %14 = arith.truncf %13 : vector<16x32xf32> to vector<16x32xbf16>
    %c0_11 = arith.constant 0 : index
    %c0_12 = arith.constant 0 : index
    %15 = vector.load %arg6[%c0_11, %c0_12] : memref<16x32xbf16, #tpu.memory_space<vmem>>, vector<16x32xbf16>
    tpu.vector_store %arg6[%c0_11, %c0_12], %14 {strides = array<i32>} : memref<16x32xbf16, #tpu.memory_space<vmem>>, vector<16x32xbf16>,
    return
  }
  func.func @transform_0(%arg0: i32) -> (i32, i32) {
    %c0_i32 = arith.constant 0 : i32
    %c0_i32_0 = arith.constant 0 : i32
    return %arg0, %c0_i32 : i32, i32
  }
  func.func @transform_1(%arg0: i32) -> (i32, i32) {
    %c0_i32 = arith.constant 0 : i32
    %c0_i32_0 = arith.constant 0 : i32
    %c0_i32_1 = arith.constant 0 : i32
    return %c0_i32, %c0_i32_0 : i32, i32
  }
  func.func @transform_2(%arg0: i32) -> (i32, i32) {
    %c0_i32 = arith.constant 0 : i32
    %c0_i32_0 = arith.constant 0 : i32
    %c0_i32_1 = arith.constant 0 : i32
    return %c0_i32, %c0_i32_0 : i32, i32
  }
  func.func @transform_3(%arg0: i32) -> (i32, i32) {
    %c0_i32 = arith.constant 0 : i32
    %c0_i32_0 = arith.constant 0 : i32
    %c0_i32_1 = arith.constant 0 : i32
    return %c0_i32, %c0_i32_0 : i32, i32
  }
  func.func @transform_4(%arg0: i32) -> (i32, i32) {
    %c0_i32 = arith.constant 0 : i32
    %c0_i32_0 = arith.constant 0 : i32
    %c0_i32_1 = arith.constant 0 : i32
    return %c0_i32, %c0_i32_0 : i32, i32
  }
  func.func @transform_5(%arg0: i32) -> (i32, i32) {
    %c0_i32 = arith.constant 0 : i32
    %c0_i32_0 = arith.constant 0 : i32
    return %arg0, %c0_i32 : i32, i32
  }
}

module attributes {stable_mosaic.version = 11 : i64} {
  func.func @_linear_kernel(%arg0: i32, %arg1: i32, %arg2: memref<16x32xbf16, #tpu.memory_space<vmem>>, %arg3: memref<32x64xbf16, #tpu.memory_space<vmem>>, %arg4: memref<1x64xf32, #tpu.memory_space<vmem>>, %arg5: memref<16x64xbf16, #tpu.memory_space<vmem>>) attributes {dimension_semantics = [#tpu.dimension_semantics<parallel>, #tpu.dimension_semantics<parallel>], iteration_bounds = array<i64: 1, 1>, scalar_prefetch = 0 : i64, scratch_operands = 0 : i64, tpu.core_type = #tpu.core_type<tc>, window_params = [{transform_indices = @transform_0, window_bounds = array<i64: 16, 32>}, {transform_indices = @transform_1, window_bounds = array<i64: 32, 64>}, {transform_indices = @transform_2, window_bounds = array<i64: 1, 64>}, {transform_indices = @transform_3, window_bounds = array<i64: 16, 64>}]} {
    %c0 = arith.constant 0 : index
    %c0_0 = arith.constant 0 : index
    %0 = vector.load %arg2[%c0, %c0_0] : memref<16x32xbf16, #tpu.memory_space<vmem>>, vector<16x32xbf16>
    %c0_1 = arith.constant 0 : index
    %c0_2 = arith.constant 0 : index
    %1 = vector.load %arg3[%c0_1, %c0_2] : memref<32x64xbf16, #tpu.memory_space<vmem>>, vector<32x64xbf16>
    %cst = arith.constant dense<0.000000e+00> : vector<16x64xf32>
    %2 = tpu.matmul %0, %1, %cst {dimension_numbers = #tpu.dot_dimension_numbers<[1], [0], [0], [1], [0, 0, 1, 1], [], []>} : vector<16x32xbf16>, vector<32x64xbf16>, vector<16x64xf32> -> vector<16x64xf32>
    %c0_3 = arith.constant 0 : index
    %c0_4 = arith.constant 0 : index
    %3 = vector.load %arg4[%c0_3, %c0_4] : memref<1x64xf32, #tpu.memory_space<vmem>>, vector<1x64xf32>
    %4 = vector.broadcast %3 : vector<1x64xf32> to vector<16x64xf32>
    %5 = arith.addf %2, %4 : vector<16x64xf32>
    %6 = arith.truncf %5 : vector<16x64xf32> to vector<16x64xbf16>
    %c0_5 = arith.constant 0 : index
    %c0_6 = arith.constant 0 : index
    %7 = vector.load %arg5[%c0_5, %c0_6] : memref<16x64xbf16, #tpu.memory_space<vmem>>, vector<16x64xbf16>
    tpu.vector_store %arg5[%c0_5, %c0_6], %6 {strides = array<i32>} : memref<16x64xbf16, #tpu.memory_space<vmem>>, vector<16x64xbf16>,
    return
  }
  func.func @transform_0(%arg0: i32, %arg1: i32) -> (i32, i32) {
    %c0_i32 = arith.constant 0 : i32
    %c0_i32_0 = arith.constant 0 : i32
    return %arg1, %c0_i32 : i32, i32
  }
  func.func @transform_1(%arg0: i32, %arg1: i32) -> (i32, i32) {
    %c0_i32 = arith.constant 0 : i32
    %c0_i32_0 = arith.constant 0 : i32
    return %c0_i32, %arg0 : i32, i32
  }
  func.func @transform_2(%arg0: i32, %arg1: i32) -> (i32, i32) {
    %c0_i32 = arith.constant 0 : i32
    %c0_i32_0 = arith.constant 0 : i32
    return %c0_i32, %arg0 : i32, i32
  }
  func.func @transform_3(%arg0: i32, %arg1: i32) -> (i32, i32) {
    %c0_i32 = arith.constant 0 : i32
    return %arg1, %arg0 : i32, i32
  }
}

module attributes {stable_mosaic.version = 11 : i64} {
  func.func @_self_attn_kernel(%arg0: i32, %arg1: memref<1x8x96xbf16, #tpu.memory_space<vmem>>, %arg2: memref<1x8x32xbf16, #tpu.memory_space<vmem>>) attributes {dimension_semantics = [#tpu.dimension_semantics<parallel>], iteration_bounds = array<i64: 2>, scalar_prefetch = 0 : i64, scratch_operands = 0 : i64, tpu.core_type = #tpu.core_type<tc>, window_params = [{transform_indices = @transform_0, window_bounds = array<i64: 1, 8, 96>}, {transform_indices = @transform_1, window_bounds = array<i64: 1, 8, 32>}]} {
    %0 = tpu.iota {dimensions = array<i32: 0>} : vector<8x8xi32>
    %1 = tpu.iota {dimensions = array<i32: 1>} : vector<8x8xi32>
    %2 = arith.cmpi sge, %0, %1 : vector<8x8xi32>
    %c0 = arith.constant 0 : index
    %c0_0 = arith.constant 0 : index
    %c0_1 = arith.constant 0 : index
    %3 = vector.load %arg1[%c0, %c0_0, %c0_1] : memref<1x8x96xbf16, #tpu.memory_space<vmem>>, vector<1x8x8xbf16>
    %4 = vector.shape_cast %3 : vector<1x8x8xbf16> to vector<8x8xbf16>
    %5 = arith.extf %4 : vector<8x8xbf16> to vector<8x8xf32>
    %cst = arith.constant 0.353553385 : f32
    %6 = vector.broadcast %cst : f32 to vector<8x8xf32>
    %7 = arith.mulf %5, %6 : vector<8x8xf32>
    %8 = arith.truncf %7 : vector<8x8xf32> to vector<8x8xbf16>
    %c0_2 = arith.constant 0 : index
    %c0_3 = arith.constant 0 : index
    %c32 = arith.constant 32 : index
    %9 = vector.load %arg1[%c0_2, %c0_3, %c32] : memref<1x8x96xbf16, #tpu.memory_space<vmem>>, vector<1x8x8xbf16>
    %10 = vector.shape_cast %9 : vector<1x8x8xbf16> to vector<8x8xbf16>
    %c0_4 = arith.constant 0 : index
    %c0_5 = arith.constant 0 : index
    %c64 = arith.constant 64 : index
    %11 = vector.load %arg1[%c0_4, %c0_5, %c64] : memref<1x8x96xbf16, #tpu.memory_space<vmem>>, vector<1x8x8xbf16>
    %12 = vector.shape_cast %11 : vector<1x8x8xbf16> to vector<8x8xbf16>
    %cst_6 = arith.constant dense<0.000000e+00> : vector<8x8xf32>
    %13 = tpu.matmul %8, %10, %cst_6 {dimension_numbers = #tpu.dot_dimension_numbers<[1], [1], [0], [0], [0, 0, 1, 0], [], []>} : vector<8x8xbf16>, vector<8x8xbf16>, vector<8x8xf32> -> vector<8x8xf32>
    %cst_7 = arith.constant -1.000000e+09 : f32
    %14 = vector.broadcast %cst_7 : f32 to vector<8x8xf32>
    %15 = arith.select %2, %13, %14 : vector<8x8xi1>, vector<8x8xf32>
    %cst_8 = arith.constant dense<0xFF800000> : vector<8xf32>
    %16 = vector.multi_reduction <maximumf>, %15, %cst_8 [1] : vector<8x8xf32> to vector<8xf32>
    %17 = vector.shape_cast %16 : vector<8xf32> to vector<8x1xf32>
    %18 = vector.broadcast %17 : vector<8x1xf32> to vector<8x8xf32>
    %19 = arith.subf %15, %18 : vector<8x8xf32>
    %20 = math.exp %19 : vector<8x8xf32>
    %cst_9 = arith.constant dense<0.000000e+00> : vector<8xf32>
    %21 = vector.multi_reduction <add>, %20, %cst_9 [1] : vector<8x8xf32> to vector<8xf32>
    %22 = vector.shape_cast %21 : vector<8xf32> to vector<8x1xf32>
    %23 = tpu.reciprocal %22 {approx = true} : vector<8x1xf32> -> vector<8x1xf32>
    %24 = vector.broadcast %23 : vector<8x1xf32> to vector<8x8xf32>
    %25 = arith.mulf %20, %24 : vector<8x8xf32>
    %26 = arith.truncf %25 : vector<8x8xf32> to vector<8x8xbf16>
    %cst_10 = arith.constant dense<0.000000e+00> : vector<8x8xf32>
    %27 = tpu.matmul %26, %12, %cst_10 {dimension_numbers = #tpu.dot_dimension_numbers<[1], [0], [0], [1], [0, 0, 1, 1], [], []>} : vector<8x8xbf16>, vector<8x8xbf16>, vector<8x8xf32> -> vector<8x8xf32>
    %c0_11 = arith.constant 0 : index
    %c0_12 = arith.constant 0 : index
    %c8 = arith.constant 8 : index
    %28 = vector.load %arg1[%c0_11, %c0_12, %c8] : memref<1x8x96xbf16, #tpu.memory_space<vmem>>, vector<1x8x8xbf16>
    %29 = vector.shape_cast %28 : vector<1x8x8xbf16> to vector<8x8xbf16>
    %30 = arith.extf %29 : vector<8x8xbf16> to vector<8x8xf32>
    %cst_13 = arith.constant 0.353553385 : f32
    %31 = vector.broadcast %cst_13 : f32 to vector<8x8xf32>
    %32 = arith.mulf %30, %31 : vector<8x8xf32>
    %33 = arith.truncf %32 : vector<8x8xf32> to vector<8x8xbf16>
    %c0_14 = arith.constant 0 : index
    %c0_15 = arith.constant 0 : index
    %c40 = arith.constant 40 : index
    %34 = vector.load %arg1[%c0_14, %c0_15, %c40] : memref<1x8x96xbf16, #tpu.memory_space<vmem>>, vector<1x8x8xbf16>
    %35 = vector.shape_cast %34 : vector<1x8x8xbf16> to vector<8x8xbf16>
    %c0_16 = arith.constant 0 : index
    %c0_17 = arith.constant 0 : index
    %c72 = arith.constant 72 : index
    %36 = vector.load %arg1[%c0_16, %c0_17, %c72] : memref<1x8x96xbf16, #tpu.memory_space<vmem>>, vector<1x8x8xbf16>
    %37 = vector.shape_cast %36 : vector<1x8x8xbf16> to vector<8x8xbf16>
    %cst_18 = arith.constant dense<0.000000e+00> : vector<8x8xf32>
    %38 = tpu.matmul %33, %35, %cst_18 {dimension_numbers = #tpu.dot_dimension_numbers<[1], [1], [0], [0], [0, 0, 1, 0], [], []>} : vector<8x8xbf16>, vector<8x8xbf16>, vector<8x8xf32> -> vector<8x8xf32>
    %cst_19 = arith.constant -1.000000e+09 : f32
    %39 = vector.broadcast %cst_19 : f32 to vector<8x8xf32>
    %40 = arith.select %2, %38, %39 : vector<8x8xi1>, vector<8x8xf32>
    %cst_20 = arith.constant dense<0xFF800000> : vector<8xf32>
    %41 = vector.multi_reduction <maximumf>, %40, %cst_20 [1] : vector<8x8xf32> to vector<8xf32>
    %42 = vector.shape_cast %41 : vector<8xf32> to vector<8x1xf32>
    %43 = vector.broadcast %42 : vector<8x1xf32> to vector<8x8xf32>
    %44 = arith.subf %40, %43 : vector<8x8xf32>
    %45 = math.exp %44 : vector<8x8xf32>
    %cst_21 = arith.constant dense<0.000000e+00> : vector<8xf32>
    %46 = vector.multi_reduction <add>, %45, %cst_21 [1] : vector<8x8xf32> to vector<8xf32>
    %47 = vector.shape_cast %46 : vector<8xf32> to vector<8x1xf32>
    %48 = tpu.reciprocal %47 {approx = true} : vector<8x1xf32> -> vector<8x1xf32>
    %49 = vector.broadcast %48 : vector<8x1xf32> to vector<8x8xf32>
    %50 = arith.mulf %45, %49 : vector<8x8xf32>
    %51 = arith.truncf %50 : vector<8x8xf32> to vector<8x8xbf16>
    %cst_22 = arith.constant dense<0.000000e+00> : vector<8x8xf32>
    %52 = tpu.matmul %51, %37, %cst_22 {dimension_numbers = #tpu.dot_dimension_numbers<[1], [0], [0], [1], [0, 0, 1, 1], [], []>} : vector<8x8xbf16>, vector<8x8xbf16>, vector<8x8xf32> -> vector<8x8xf32>
    %c0_23 = arith.constant 0 : index
    %c0_24 = arith.constant 0 : index
    %c16 = arith.constant 16 : index
    %53 = vector.load %arg1[%c0_23, %c0_24, %c16] : memref<1x8x96xbf16, #tpu.memory_space<vmem>>, vector<1x8x8xbf16>
    %54 = vector.shape_cast %53 : vector<1x8x8xbf16> to vector<8x8xbf16>
    %55 = arith.extf %54 : vector<8x8xbf16> to vector<8x8xf32>
    %cst_25 = arith.constant 0.353553385 : f32
    %56 = vector.broadcast %cst_25 : f32 to vector<8x8xf32>
    %57 = arith.mulf %55, %56 : vector<8x8xf32>
    %58 = arith.truncf %57 : vector<8x8xf32> to vector<8x8xbf16>
    %c0_26 = arith.constant 0 : index
    %c0_27 = arith.constant 0 : index
    %c48 = arith.constant 48 : index
    %59 = vector.load %arg1[%c0_26, %c0_27, %c48] : memref<1x8x96xbf16, #tpu.memory_space<vmem>>, vector<1x8x8xbf16>
    %60 = vector.shape_cast %59 : vector<1x8x8xbf16> to vector<8x8xbf16>
    %c0_28 = arith.constant 0 : index
    %c0_29 = arith.constant 0 : index
    %c80 = arith.constant 80 : index
    %61 = vector.load %arg1[%c0_28, %c0_29, %c80] : memref<1x8x96xbf16, #tpu.memory_space<vmem>>, vector<1x8x8xbf16>
    %62 = vector.shape_cast %61 : vector<1x8x8xbf16> to vector<8x8xbf16>
    %cst_30 = arith.constant dense<0.000000e+00> : vector<8x8xf32>
    %63 = tpu.matmul %58, %60, %cst_30 {dimension_numbers = #tpu.dot_dimension_numbers<[1], [1], [0], [0], [0, 0, 1, 0], [], []>} : vector<8x8xbf16>, vector<8x8xbf16>, vector<8x8xf32> -> vector<8x8xf32>
    %cst_31 = arith.constant -1.000000e+09 : f32
    %64 = vector.broadcast %cst_31 : f32 to vector<8x8xf32>
    %65 = arith.select %2, %63, %64 : vector<8x8xi1>, vector<8x8xf32>
    %cst_32 = arith.constant dense<0xFF800000> : vector<8xf32>
    %66 = vector.multi_reduction <maximumf>, %65, %cst_32 [1] : vector<8x8xf32> to vector<8xf32>
    %67 = vector.shape_cast %66 : vector<8xf32> to vector<8x1xf32>
    %68 = vector.broadcast %67 : vector<8x1xf32> to vector<8x8xf32>
    %69 = arith.subf %65, %68 : vector<8x8xf32>
    %70 = math.exp %69 : vector<8x8xf32>
    %cst_33 = arith.constant dense<0.000000e+00> : vector<8xf32>
    %71 = vector.multi_reduction <add>, %70, %cst_33 [1] : vector<8x8xf32> to vector<8xf32>
    %72 = vector.shape_cast %71 : vector<8xf32> to vector<8x1xf32>
    %73 = tpu.reciprocal %72 {approx = true} : vector<8x1xf32> -> vector<8x1xf32>
    %74 = vector.broadcast %73 : vector<8x1xf32> to vector<8x8xf32>
    %75 = arith.mulf %70, %74 : vector<8x8xf32>
    %76 = arith.truncf %75 : vector<8x8xf32> to vector<8x8xbf16>
    %cst_34 = arith.constant dense<0.000000e+00> : vector<8x8xf32>
    %77 = tpu.matmul %76, %62, %cst_34 {dimension_numbers = #tpu.dot_dimension_numbers<[1], [0], [0], [1], [0, 0, 1, 1], [], []>} : vector<8x8xbf16>, vector<8x8xbf16>, vector<8x8xf32> -> vector<8x8xf32>
    %c0_35 = arith.constant 0 : index
    %c0_36 = arith.constant 0 : index
    %c24 = arith.constant 24 : index
    %78 = vector.load %arg1[%c0_35, %c0_36, %c24] : memref<1x8x96xbf16, #tpu.memory_space<vmem>>, vector<1x8x8xbf16>
    %79 = vector.shape_cast %78 : vector<1x8x8xbf16> to vector<8x8xbf16>
    %80 = arith.extf %79 : vector<8x8xbf16> to vector<8x8xf32>
    %cst_37 = arith.constant 0.353553385 : f32
    %81 = vector.broadcast %cst_37 : f32 to vector<8x8xf32>
    %82 = arith.mulf %80, %81 : vector<8x8xf32>
    %83 = arith.truncf %82 : vector<8x8xf32> to vector<8x8xbf16>
    %c0_38 = arith.constant 0 : index
    %c0_39 = arith.constant 0 : index
    %c56 = arith.constant 56 : index
    %84 = vector.load %arg1[%c0_38, %c0_39, %c56] : memref<1x8x96xbf16, #tpu.memory_space<vmem>>, vector<1x8x8xbf16>
    %85 = vector.shape_cast %84 : vector<1x8x8xbf16> to vector<8x8xbf16>
    %c0_40 = arith.constant 0 : index
    %c0_41 = arith.constant 0 : index
    %c88 = arith.constant 88 : index
    %86 = vector.load %arg1[%c0_40, %c0_41, %c88] : memref<1x8x96xbf16, #tpu.memory_space<vmem>>, vector<1x8x8xbf16>
    %87 = vector.shape_cast %86 : vector<1x8x8xbf16> to vector<8x8xbf16>
    %cst_42 = arith.constant dense<0.000000e+00> : vector<8x8xf32>
    %88 = tpu.matmul %83, %85, %cst_42 {dimension_numbers = #tpu.dot_dimension_numbers<[1], [1], [0], [0], [0, 0, 1, 0], [], []>} : vector<8x8xbf16>, vector<8x8xbf16>, vector<8x8xf32> -> vector<8x8xf32>
    %cst_43 = arith.constant -1.000000e+09 : f32
    %89 = vector.broadcast %cst_43 : f32 to vector<8x8xf32>
    %90 = arith.select %2, %88, %89 : vector<8x8xi1>, vector<8x8xf32>
    %cst_44 = arith.constant dense<0xFF800000> : vector<8xf32>
    %91 = vector.multi_reduction <maximumf>, %90, %cst_44 [1] : vector<8x8xf32> to vector<8xf32>
    %92 = vector.shape_cast %91 : vector<8xf32> to vector<8x1xf32>
    %93 = vector.broadcast %92 : vector<8x1xf32> to vector<8x8xf32>
    %94 = arith.subf %90, %93 : vector<8x8xf32>
    %95 = math.exp %94 : vector<8x8xf32>
    %cst_45 = arith.constant dense<0.000000e+00> : vector<8xf32>
    %96 = vector.multi_reduction <add>, %95, %cst_45 [1] : vector<8x8xf32> to vector<8xf32>
    %97 = vector.shape_cast %96 : vector<8xf32> to vector<8x1xf32>
    %98 = tpu.reciprocal %97 {approx = true} : vector<8x1xf32> -> vector<8x1xf32>
    %99 = vector.broadcast %98 : vector<8x1xf32> to vector<8x8xf32>
    %100 = arith.mulf %95, %99 : vector<8x8xf32>
    %101 = arith.truncf %100 : vector<8x8xf32> to vector<8x8xbf16>
    %cst_46 = arith.constant dense<0.000000e+00> : vector<8x8xf32>
    %102 = tpu.matmul %101, %87, %cst_46 {dimension_numbers = #tpu.dot_dimension_numbers<[1], [0], [0], [1], [0, 0, 1, 1], [], []>} : vector<8x8xbf16>, vector<8x8xbf16>, vector<8x8xf32> -> vector<8x8xf32>
    %103 = tpu.concatenate %27, %52, %77, %102 in 1 : vector<8x8xf32>, vector<8x8xf32>, vector<8x8xf32>, vector<8x8xf32> -> vector<8x32xf32>
    %104 = arith.truncf %103 : vector<8x32xf32> to vector<8x32xbf16>
    %c0_47 = arith.constant 0 : index
    %c0_48 = arith.constant 0 : index
    %c0_49 = arith.constant 0 : index
    %105 = vector.load %arg2[%c0_47, %c0_48, %c0_49] : memref<1x8x32xbf16, #tpu.memory_space<vmem>>, vector<1x8x32xbf16>
    %106 = vector.shape_cast %105 : vector<1x8x32xbf16> to vector<8x32xbf16>
    %107 = vector.shape_cast %104 : vector<8x32xbf16> to vector<1x8x32xbf16>
    tpu.vector_store %arg2[%c0_47, %c0_48, %c0_49], %107 {strides = array<i32>} : memref<1x8x32xbf16, #tpu.memory_space<vmem>>, vector<1x8x32xbf16>,
    return
  }
  func.func @transform_0(%arg0: i32) -> (i32, i32, i32) {
    %c0_i32 = arith.constant 0 : i32
    %c0_i32_0 = arith.constant 0 : i32
    %c0_i32_1 = arith.constant 0 : i32
    return %arg0, %c0_i32, %c0_i32_0 : i32, i32, i32
  }
  func.func @transform_1(%arg0: i32) -> (i32, i32, i32) {
    %c0_i32 = arith.constant 0 : i32
    %c0_i32_0 = arith.constant 0 : i32
    %c0_i32_1 = arith.constant 0 : i32
    return %arg0, %c0_i32, %c0_i32_0 : i32, i32, i32
  }
}

module attributes {stable_mosaic.version = 11 : i64} {
  func.func @_cross_attn_kernel(%arg0: i32, %arg1: memref<1x8x32xbf16, #tpu.memory_space<vmem>>, %arg2: memref<1x8x64xbf16, #tpu.memory_space<vmem>>, %arg3: memref<1x8x32xbf16, #tpu.memory_space<vmem>>) attributes {dimension_semantics = [#tpu.dimension_semantics<parallel>], iteration_bounds = array<i64: 2>, scalar_prefetch = 0 : i64, scratch_operands = 0 : i64, tpu.core_type = #tpu.core_type<tc>, window_params = [{transform_indices = @transform_0, window_bounds = array<i64: 1, 8, 32>}, {transform_indices = @transform_1, window_bounds = array<i64: 1, 8, 64>}, {transform_indices = @transform_2, window_bounds = array<i64: 1, 8, 32>}]} {
    %c0 = arith.constant 0 : index
    %c0_0 = arith.constant 0 : index
    %c0_1 = arith.constant 0 : index
    %0 = vector.load %arg1[%c0, %c0_0, %c0_1] : memref<1x8x32xbf16, #tpu.memory_space<vmem>>, vector<1x8x8xbf16>
    %1 = vector.shape_cast %0 : vector<1x8x8xbf16> to vector<8x8xbf16>
    %2 = arith.extf %1 : vector<8x8xbf16> to vector<8x8xf32>
    %cst = arith.constant 0.353553385 : f32
    %3 = vector.broadcast %cst : f32 to vector<8x8xf32>
    %4 = arith.mulf %2, %3 : vector<8x8xf32>
    %5 = arith.truncf %4 : vector<8x8xf32> to vector<8x8xbf16>
    %c0_2 = arith.constant 0 : index
    %c0_3 = arith.constant 0 : index
    %c0_4 = arith.constant 0 : index
    %6 = vector.load %arg2[%c0_2, %c0_3, %c0_4] : memref<1x8x64xbf16, #tpu.memory_space<vmem>>, vector<1x8x8xbf16>
    %7 = vector.shape_cast %6 : vector<1x8x8xbf16> to vector<8x8xbf16>
    %c0_5 = arith.constant 0 : index
    %c0_6 = arith.constant 0 : index
    %c32 = arith.constant 32 : index
    %8 = vector.load %arg2[%c0_5, %c0_6, %c32] : memref<1x8x64xbf16, #tpu.memory_space<vmem>>, vector<1x8x8xbf16>
    %9 = vector.shape_cast %8 : vector<1x8x8xbf16> to vector<8x8xbf16>
    %cst_7 = arith.constant dense<0.000000e+00> : vector<8x8xf32>
    %10 = tpu.matmul %5, %7, %cst_7 {dimension_numbers = #tpu.dot_dimension_numbers<[1], [1], [0], [0], [0, 0, 1, 0], [], []>} : vector<8x8xbf16>, vector<8x8xbf16>, vector<8x8xf32> -> vector<8x8xf32>
    %cst_8 = arith.constant dense<0xFF800000> : vector<8xf32>
    %11 = vector.multi_reduction <maximumf>, %10, %cst_8 [1] : vector<8x8xf32> to vector<8xf32>
    %12 = vector.shape_cast %11 : vector<8xf32> to vector<8x1xf32>
    %13 = vector.broadcast %12 : vector<8x1xf32> to vector<8x8xf32>
    %14 = arith.subf %10, %13 : vector<8x8xf32>
    %15 = math.exp %14 : vector<8x8xf32>
    %cst_9 = arith.constant dense<0.000000e+00> : vector<8xf32>
    %16 = vector.multi_reduction <add>, %15, %cst_9 [1] : vector<8x8xf32> to vector<8xf32>
    %17 = vector.shape_cast %16 : vector<8xf32> to vector<8x1xf32>
    %18 = tpu.reciprocal %17 {approx = true} : vector<8x1xf32> -> vector<8x1xf32>
    %19 = vector.broadcast %18 : vector<8x1xf32> to vector<8x8xf32>
    %20 = arith.mulf %15, %19 : vector<8x8xf32>
    %21 = arith.truncf %20 : vector<8x8xf32> to vector<8x8xbf16>
    %cst_10 = arith.constant dense<0.000000e+00> : vector<8x8xf32>
    %22 = tpu.matmul %21, %9, %cst_10 {dimension_numbers = #tpu.dot_dimension_numbers<[1], [0], [0], [1], [0, 0, 1, 1], [], []>} : vector<8x8xbf16>, vector<8x8xbf16>, vector<8x8xf32> -> vector<8x8xf32>
    %c0_11 = arith.constant 0 : index
    %c0_12 = arith.constant 0 : index
    %c8 = arith.constant 8 : index
    %23 = vector.load %arg1[%c0_11, %c0_12, %c8] : memref<1x8x32xbf16, #tpu.memory_space<vmem>>, vector<1x8x8xbf16>
    %24 = vector.shape_cast %23 : vector<1x8x8xbf16> to vector<8x8xbf16>
    %25 = arith.extf %24 : vector<8x8xbf16> to vector<8x8xf32>
    %cst_13 = arith.constant 0.353553385 : f32
    %26 = vector.broadcast %cst_13 : f32 to vector<8x8xf32>
    %27 = arith.mulf %25, %26 : vector<8x8xf32>
    %28 = arith.truncf %27 : vector<8x8xf32> to vector<8x8xbf16>
    %c0_14 = arith.constant 0 : index
    %c0_15 = arith.constant 0 : index
    %c8_16 = arith.constant 8 : index
    %29 = vector.load %arg2[%c0_14, %c0_15, %c8_16] : memref<1x8x64xbf16, #tpu.memory_space<vmem>>, vector<1x8x8xbf16>
    %30 = vector.shape_cast %29 : vector<1x8x8xbf16> to vector<8x8xbf16>
    %c0_17 = arith.constant 0 : index
    %c0_18 = arith.constant 0 : index
    %c40 = arith.constant 40 : index
    %31 = vector.load %arg2[%c0_17, %c0_18, %c40] : memref<1x8x64xbf16, #tpu.memory_space<vmem>>, vector<1x8x8xbf16>
    %32 = vector.shape_cast %31 : vector<1x8x8xbf16> to vector<8x8xbf16>
    %cst_19 = arith.constant dense<0.000000e+00> : vector<8x8xf32>
    %33 = tpu.matmul %28, %30, %cst_19 {dimension_numbers = #tpu.dot_dimension_numbers<[1], [1], [0], [0], [0, 0, 1, 0], [], []>} : vector<8x8xbf16>, vector<8x8xbf16>, vector<8x8xf32> -> vector<8x8xf32>
    %cst_20 = arith.constant dense<0xFF800000> : vector<8xf32>
    %34 = vector.multi_reduction <maximumf>, %33, %cst_20 [1] : vector<8x8xf32> to vector<8xf32>
    %35 = vector.shape_cast %34 : vector<8xf32> to vector<8x1xf32>
    %36 = vector.broadcast %35 : vector<8x1xf32> to vector<8x8xf32>
    %37 = arith.subf %33, %36 : vector<8x8xf32>
    %38 = math.exp %37 : vector<8x8xf32>
    %cst_21 = arith.constant dense<0.000000e+00> : vector<8xf32>
    %39 = vector.multi_reduction <add>, %38, %cst_21 [1] : vector<8x8xf32> to vector<8xf32>
    %40 = vector.shape_cast %39 : vector<8xf32> to vector<8x1xf32>
    %41 = tpu.reciprocal %40 {approx = true} : vector<8x1xf32> -> vector<8x1xf32>
    %42 = vector.broadcast %41 : vector<8x1xf32> to vector<8x8xf32>
    %43 = arith.mulf %38, %42 : vector<8x8xf32>
    %44 = arith.truncf %43 : vector<8x8xf32> to vector<8x8xbf16>
    %cst_22 = arith.constant dense<0.000000e+00> : vector<8x8xf32>
    %45 = tpu.matmul %44, %32, %cst_22 {dimension_numbers = #tpu.dot_dimension_numbers<[1], [0], [0], [1], [0, 0, 1, 1], [], []>} : vector<8x8xbf16>, vector<8x8xbf16>, vector<8x8xf32> -> vector<8x8xf32>
    %c0_23 = arith.constant 0 : index
    %c0_24 = arith.constant 0 : index
    %c16 = arith.constant 16 : index
    %46 = vector.load %arg1[%c0_23, %c0_24, %c16] : memref<1x8x32xbf16, #tpu.memory_space<vmem>>, vector<1x8x8xbf16>
    %47 = vector.shape_cast %46 : vector<1x8x8xbf16> to vector<8x8xbf16>
    %48 = arith.extf %47 : vector<8x8xbf16> to vector<8x8xf32>
    %cst_25 = arith.constant 0.353553385 : f32
    %49 = vector.broadcast %cst_25 : f32 to vector<8x8xf32>
    %50 = arith.mulf %48, %49 : vector<8x8xf32>
    %51 = arith.truncf %50 : vector<8x8xf32> to vector<8x8xbf16>
    %c0_26 = arith.constant 0 : index
    %c0_27 = arith.constant 0 : index
    %c16_28 = arith.constant 16 : index
    %52 = vector.load %arg2[%c0_26, %c0_27, %c16_28] : memref<1x8x64xbf16, #tpu.memory_space<vmem>>, vector<1x8x8xbf16>
    %53 = vector.shape_cast %52 : vector<1x8x8xbf16> to vector<8x8xbf16>
    %c0_29 = arith.constant 0 : index
    %c0_30 = arith.constant 0 : index
    %c48 = arith.constant 48 : index
    %54 = vector.load %arg2[%c0_29, %c0_30, %c48] : memref<1x8x64xbf16, #tpu.memory_space<vmem>>, vector<1x8x8xbf16>
    %55 = vector.shape_cast %54 : vector<1x8x8xbf16> to vector<8x8xbf16>
    %cst_31 = arith.constant dense<0.000000e+00> : vector<8x8xf32>
    %56 = tpu.matmul %51, %53, %cst_31 {dimension_numbers = #tpu.dot_dimension_numbers<[1], [1], [0], [0], [0, 0, 1, 0], [], []>} : vector<8x8xbf16>, vector<8x8xbf16>, vector<8x8xf32> -> vector<8x8xf32>
    %cst_32 = arith.constant dense<0xFF800000> : vector<8xf32>
    %57 = vector.multi_reduction <maximumf>, %56, %cst_32 [1] : vector<8x8xf32> to vector<8xf32>
    %58 = vector.shape_cast %57 : vector<8xf32> to vector<8x1xf32>
    %59 = vector.broadcast %58 : vector<8x1xf32> to vector<8x8xf32>
    %60 = arith.subf %56, %59 : vector<8x8xf32>
    %61 = math.exp %60 : vector<8x8xf32>
    %cst_33 = arith.constant dense<0.000000e+00> : vector<8xf32>
    %62 = vector.multi_reduction <add>, %61, %cst_33 [1] : vector<8x8xf32> to vector<8xf32>
    %63 = vector.shape_cast %62 : vector<8xf32> to vector<8x1xf32>
    %64 = tpu.reciprocal %63 {approx = true} : vector<8x1xf32> -> vector<8x1xf32>
    %65 = vector.broadcast %64 : vector<8x1xf32> to vector<8x8xf32>
    %66 = arith.mulf %61, %65 : vector<8x8xf32>
    %67 = arith.truncf %66 : vector<8x8xf32> to vector<8x8xbf16>
    %cst_34 = arith.constant dense<0.000000e+00> : vector<8x8xf32>
    %68 = tpu.matmul %67, %55, %cst_34 {dimension_numbers = #tpu.dot_dimension_numbers<[1], [0], [0], [1], [0, 0, 1, 1], [], []>} : vector<8x8xbf16>, vector<8x8xbf16>, vector<8x8xf32> -> vector<8x8xf32>
    %c0_35 = arith.constant 0 : index
    %c0_36 = arith.constant 0 : index
    %c24 = arith.constant 24 : index
    %69 = vector.load %arg1[%c0_35, %c0_36, %c24] : memref<1x8x32xbf16, #tpu.memory_space<vmem>>, vector<1x8x8xbf16>
    %70 = vector.shape_cast %69 : vector<1x8x8xbf16> to vector<8x8xbf16>
    %71 = arith.extf %70 : vector<8x8xbf16> to vector<8x8xf32>
    %cst_37 = arith.constant 0.353553385 : f32
    %72 = vector.broadcast %cst_37 : f32 to vector<8x8xf32>
    %73 = arith.mulf %71, %72 : vector<8x8xf32>
    %74 = arith.truncf %73 : vector<8x8xf32> to vector<8x8xbf16>
    %c0_38 = arith.constant 0 : index
    %c0_39 = arith.constant 0 : index
    %c24_40 = arith.constant 24 : index
    %75 = vector.load %arg2[%c0_38, %c0_39, %c24_40] : memref<1x8x64xbf16, #tpu.memory_space<vmem>>, vector<1x8x8xbf16>
    %76 = vector.shape_cast %75 : vector<1x8x8xbf16> to vector<8x8xbf16>
    %c0_41 = arith.constant 0 : index
    %c0_42 = arith.constant 0 : index
    %c56 = arith.constant 56 : index
    %77 = vector.load %arg2[%c0_41, %c0_42, %c56] : memref<1x8x64xbf16, #tpu.memory_space<vmem>>, vector<1x8x8xbf16>
    %78 = vector.shape_cast %77 : vector<1x8x8xbf16> to vector<8x8xbf16>
    %cst_43 = arith.constant dense<0.000000e+00> : vector<8x8xf32>
    %79 = tpu.matmul %74, %76, %cst_43 {dimension_numbers = #tpu.dot_dimension_numbers<[1], [1], [0], [0], [0, 0, 1, 0], [], []>} : vector<8x8xbf16>, vector<8x8xbf16>, vector<8x8xf32> -> vector<8x8xf32>
    %cst_44 = arith.constant dense<0xFF800000> : vector<8xf32>
    %80 = vector.multi_reduction <maximumf>, %79, %cst_44 [1] : vector<8x8xf32> to vector<8xf32>
    %81 = vector.shape_cast %80 : vector<8xf32> to vector<8x1xf32>
    %82 = vector.broadcast %81 : vector<8x1xf32> to vector<8x8xf32>
    %83 = arith.subf %79, %82 : vector<8x8xf32>
    %84 = math.exp %83 : vector<8x8xf32>
    %cst_45 = arith.constant dense<0.000000e+00> : vector<8xf32>
    %85 = vector.multi_reduction <add>, %84, %cst_45 [1] : vector<8x8xf32> to vector<8xf32>
    %86 = vector.shape_cast %85 : vector<8xf32> to vector<8x1xf32>
    %87 = tpu.reciprocal %86 {approx = true} : vector<8x1xf32> -> vector<8x1xf32>
    %88 = vector.broadcast %87 : vector<8x1xf32> to vector<8x8xf32>
    %89 = arith.mulf %84, %88 : vector<8x8xf32>
    %90 = arith.truncf %89 : vector<8x8xf32> to vector<8x8xbf16>
    %cst_46 = arith.constant dense<0.000000e+00> : vector<8x8xf32>
    %91 = tpu.matmul %90, %78, %cst_46 {dimension_numbers = #tpu.dot_dimension_numbers<[1], [0], [0], [1], [0, 0, 1, 1], [], []>} : vector<8x8xbf16>, vector<8x8xbf16>, vector<8x8xf32> -> vector<8x8xf32>
    %92 = tpu.concatenate %22, %45, %68, %91 in 1 : vector<8x8xf32>, vector<8x8xf32>, vector<8x8xf32>, vector<8x8xf32> -> vector<8x32xf32>
    %93 = arith.truncf %92 : vector<8x32xf32> to vector<8x32xbf16>
    %c0_47 = arith.constant 0 : index
    %c0_48 = arith.constant 0 : index
    %c0_49 = arith.constant 0 : index
    %94 = vector.load %arg3[%c0_47, %c0_48, %c0_49] : memref<1x8x32xbf16, #tpu.memory_space<vmem>>, vector<1x8x32xbf16>
    %95 = vector.shape_cast %94 : vector<1x8x32xbf16> to vector<8x32xbf16>
    %96 = vector.shape_cast %93 : vector<8x32xbf16> to vector<1x8x32xbf16>
    tpu.vector_store %arg3[%c0_47, %c0_48, %c0_49], %96 {strides = array<i32>} : memref<1x8x32xbf16, #tpu.memory_space<vmem>>, vector<1x8x32xbf16>,
    return
  }
  func.func @transform_0(%arg0: i32) -> (i32, i32, i32) {
    %c0_i32 = arith.constant 0 : i32
    %c0_i32_0 = arith.constant 0 : i32
    %c0_i32_1 = arith.constant 0 : i32
    return %arg0, %c0_i32, %c0_i32_0 : i32, i32, i32
  }
  func.func @transform_1(%arg0: i32) -> (i32, i32, i32) {
    %c0_i32 = arith.constant 0 : i32
    %c0_i32_0 = arith.constant 0 : i32
    %c0_i32_1 = arith.constant 0 : i32
    return %arg0, %c0_i32, %c0_i32_0 : i32, i32, i32
  }
  func.func @transform_2(%arg0: i32) -> (i32, i32, i32) {
    %c0_i32 = arith.constant 0 : i32
    %c0_i32_0 = arith.constant 0 : i32
    %c0_i32_1 = arith.constant 0 : i32
    return %arg0, %c0_i32, %c0_i32_0 : i32, i32, i32
  }
}

module attributes {stable_mosaic.version = 11 : i64} {
  func.func @_linear_kernel(%arg0: i32, %arg1: i32, %arg2: memref<16x32xbf16, #tpu.memory_space<vmem>>, %arg3: memref<32x16xbf16, #tpu.memory_space<vmem>>, %arg4: memref<1x16xf32, #tpu.memory_space<vmem>>, %arg5: memref<16x16xf32, #tpu.memory_space<vmem>>) attributes {dimension_semantics = [#tpu.dimension_semantics<parallel>, #tpu.dimension_semantics<parallel>], iteration_bounds = array<i64: 1, 1>, scalar_prefetch = 0 : i64, scratch_operands = 0 : i64, tpu.core_type = #tpu.core_type<tc>, window_params = [{transform_indices = @transform_0, window_bounds = array<i64: 16, 32>}, {transform_indices = @transform_1, window_bounds = array<i64: 32, 16>}, {transform_indices = @transform_2, window_bounds = array<i64: 1, 16>}, {transform_indices = @transform_3, window_bounds = array<i64: 16, 16>}]} {
    %c0 = arith.constant 0 : index
    %c0_0 = arith.constant 0 : index
    %0 = vector.load %arg2[%c0, %c0_0] : memref<16x32xbf16, #tpu.memory_space<vmem>>, vector<16x32xbf16>
    %c0_1 = arith.constant 0 : index
    %c0_2 = arith.constant 0 : index
    %1 = vector.load %arg3[%c0_1, %c0_2] : memref<32x16xbf16, #tpu.memory_space<vmem>>, vector<32x16xbf16>
    %cst = arith.constant dense<0.000000e+00> : vector<16x16xf32>
    %2 = tpu.matmul %0, %1, %cst {dimension_numbers = #tpu.dot_dimension_numbers<[1], [0], [0], [1], [0, 0, 1, 1], [], []>} : vector<16x32xbf16>, vector<32x16xbf16>, vector<16x16xf32> -> vector<16x16xf32>
    %c0_3 = arith.constant 0 : index
    %c0_4 = arith.constant 0 : index
    %3 = vector.load %arg4[%c0_3, %c0_4] : memref<1x16xf32, #tpu.memory_space<vmem>>, vector<1x16xf32>
    %4 = vector.broadcast %3 : vector<1x16xf32> to vector<16x16xf32>
    %5 = arith.addf %2, %4 : vector<16x16xf32>
    %c0_5 = arith.constant 0 : index
    %c0_6 = arith.constant 0 : index
    %6 = vector.load %arg5[%c0_5, %c0_6] : memref<16x16xf32, #tpu.memory_space<vmem>>, vector<16x16xf32>
    tpu.vector_store %arg5[%c0_5, %c0_6], %5 {strides = array<i32>} : memref<16x16xf32, #tpu.memory_space<vmem>>, vector<16x16xf32>,
    return
  }
  func.func @transform_0(%arg0: i32, %arg1: i32) -> (i32, i32) {
    %c0_i32 = arith.constant 0 : i32
    %c0_i32_0 = arith.constant 0 : i32
    return %arg1, %c0_i32 : i32, i32
  }
  func.func @transform_1(%arg0: i32, %arg1: i32) -> (i32, i32) {
    %c0_i32 = arith.constant 0 : i32
    %c0_i32_0 = arith.constant 0 : i32
    return %c0_i32, %arg0 : i32, i32
  }
  func.func @transform_2(%arg0: i32, %arg1: i32) -> (i32, i32) {
    %c0_i32 = arith.constant 0 : i32
    %c0_i32_0 = arith.constant 0 : i32
    return %c0_i32, %arg0 : i32, i32
  }
  func.func @transform_3(%arg0: i32, %arg1: i32) -> (i32, i32) {
    %c0_i32 = arith.constant 0 : i32
    return %arg1, %arg0 : i32, i32
  }
}

</mosaic_0001>

<llo_original>
// kernel: transformer_forward.37
$region0: #{transformer_forward.37}
  #allocation0 [shape = 'u32[]', space=smem, size = 0x4, offset = 0x4, fixed_abs, tag = 'smem constant byte address 0x4 - core index']
  #allocation1 [shape = 'u32[72,128]{1,0:T(1,128)}', space=vmem, size = 0x9000, scoped, tag = 'internal scratch']
  %s0 = inlined_call_operand.vmem [shape: bf16[16,32], index: 0, kind: input, shape index: {}]
  %s1 = inlined_call_operand.vmem [shape: bf16[32,32], index: 1, kind: input, shape index: {}]
  %s2 = inlined_call_operand.vmem [shape: f32[1,32], index: 2, kind: input, shape index: {}]
  %s3 = inlined_call_operand.vmem [shape: bf16[16,32], index: 3, kind: output, shape index: {}]
  %s4 = sld [smem:[#allocation0]]
  $region22: #{transformer_forward.37} parent=0
    _
  %s6 = ssub.s32 1, %s4
  %s7 = scalar_select 0, %s6, %s4
  // Predicated region
  $region2: #{transformer_forward.37} parent=0 // pred_check
    _
  $region3: #{transformer_forward.37} parent=0 // pred_check_branch
    %9 = sbr.rel (0) target = $region5
  $region4: #{transformer_forward.37} parent=0 // pred_region
    _
  $region5: #{transformer_forward.37} parent=0 // pred_fallthru
    _
  // Predicated region
  $region6: #{transformer_forward.37} parent=0 // pred_check
    _
  $region7: #{transformer_forward.37} parent=0 // pred_check_branch
    %11 = sbr.rel (0) target = $region9
  $region8: #{transformer_forward.37} parent=0 // pred_region
    _
  $region9: #{transformer_forward.37} parent=0 // pred_fallthru
    _
  // Predicated region
  $region10: #{transformer_forward.37} parent=0 // pred_check
    _
  $region11: #{transformer_forward.37} parent=0 // pred_check_branch
    %13 = sbr.rel (0) target = $region13
  $region12: #{transformer_forward.37} parent=0 // pred_region
    _
  $region13: #{transformer_forward.37} parent=0 // pred_fallthru
    _
  %v15 = vld [vmem:[%s0] sm:$0xf]
  %v16 = vld [vmem:[%s0 + $0x4] sm:$0xf]
  %v17 = vld [vmem:[%s1] sm:$0xf]
  %v18 = vld [vmem:[%s1 + $0x4] sm:$0xf]
  %v19 = vld [vmem:[%s1 + $0x8] sm:$0xf]
  %v20 = vld [vmem:[%s1 + $0xc] sm:$0xf]
  %v21 = vld [vmem:[%s2] sm:$0x1]
  %v23 = vperm.slane %v21, 0
  %v27 = vunpack.c.l.b16 %v15
  %v28 = vunpack.c.l.b16 %v16
  %v29 = vpack.c.b16 %v28, %v27
  %v34 = vunpack.c.l.b16 %v17
  %v35 = vunpack.c.l.b16 %v18
  %v36 = vunpack.c.l.b16 %v19
  %v37 = vunpack.c.l.b16 %v20
  %v38 = vpack.c.b16 %v35, %v34
  %v39 = vpack.c.b16 %v37, %v36
  %vm42 = vcmask 261120
  %v44 = vsel %vm42, %v29, 0
  %46 = vmatpush.bf16.msra.mxu0 0
  %47 = vmatpush.bf16.msra.mxu0 0
  %48 = vmatpush.bf16.msra.mxu0 0
  %49 = vmatpush.bf16.msra.mxu0 0
  %50 = vmatpush.bf16.msra.mxu0 0
  %51 = vmatpush.bf16.msra.mxu0 0
  %52 = vmatpush.bf16.msra.mxu0 %v39
  %53 = vmatpush.bf16.msra.mxu0 %v38
  %54 = vmatmul.bf16.gmra.mxu0 %v44
  %v55 = vpop.f32.mrf.mxu0
  %v56 = vadd.f32 %v23, %v55
  %v57 = vpop.f32.mrf.mxu0
  %v58 = vadd.f32 %v23, %v57
  %59 = vdwg.mxu0
  %v60 = vpack.c.bf16 %v56, %v56
  %v61 = vpack.c.bf16 %v58, %v58
  %vm62 = vcmask 257024
  %63 = vst.msk [vmem:[%s3] sm:$0xf] %vm62, %v60
  %64 = vst.msk [vmem:[%s3 + $0x4] sm:$0xf] %vm62, %v61
  // Predicated region
  $region14: #{transformer_forward.37} parent=0 // pred_check
    _
  $region15: #{transformer_forward.37} parent=0 // pred_check_branch
    %66 = sbr.rel (0) target = $region17
  $region16: #{transformer_forward.37} parent=0 // pred_region
    _
  $region17: #{transformer_forward.37} parent=0 // pred_fallthru
    _
  // Predicated region
  $region18: #{transformer_forward.37} parent=0 // pred_check
    _
  $region19: #{transformer_forward.37} parent=0 // pred_check_branch
    %68 = sbr.rel (0) target = $region21
  $region20: #{transformer_forward.37} parent=0 // pred_region
    _
  $region21: #{transformer_forward.37} parent=0 // pred_fallthru
    _

// kernel: transformer_forward.35
$region0: #{transformer_forward.35}
  #allocation0 [shape = 'u32[]', space=smem, size = 0x4, offset = 0x4, fixed_abs, tag = 'smem constant byte address 0x4 - core index']
  #allocation1 [shape = 'u32[72,128]{1,0:T(1,128)}', space=vmem, size = 0x9000, scoped, tag = 'internal scratch']
  %s0 = inlined_call_operand.vmem [shape: bf16[16,32], index: 0, kind: input, shape index: {}]
  %s1 = inlined_call_operand.vmem [shape: bf16[32,96], index: 1, kind: input, shape index: {}]
  %s2 = inlined_call_operand.vmem [shape: f32[1,96], index: 2, kind: input, shape index: {}]
  %s3 = inlined_call_operand.vmem [shape: bf16[16,96], index: 3, kind: output, shape index: {}]
  %s4 = sld [smem:[#allocation0]]
  $region22: #{transformer_forward.35} parent=0
    _
  %s6 = ssub.s32 1, %s4
  %s7 = scalar_select 0, %s6, %s4
  // Predicated region
  $region2: #{transformer_forward.35} parent=0 // pred_check
    _
  $region3: #{transformer_forward.35} parent=0 // pred_check_branch
    %9 = sbr.rel (0) target = $region5
  $region4: #{transformer_forward.35} parent=0 // pred_region
    _
  $region5: #{transformer_forward.35} parent=0 // pred_fallthru
    _
  // Predicated region
  $region6: #{transformer_forward.35} parent=0 // pred_check
    _
  $region7: #{transformer_forward.35} parent=0 // pred_check_branch
    %11 = sbr.rel (0) target = $region9
  $region8: #{transformer_forward.35} parent=0 // pred_region
    _
  $region9: #{transformer_forward.35} parent=0 // pred_fallthru
    _
  // Predicated region
  $region10: #{transformer_forward.35} parent=0 // pred_check
    _
  $region11: #{transformer_forward.35} parent=0 // pred_check_branch
    %13 = sbr.rel (0) target = $region13
  $region12: #{transformer_forward.35} parent=0 // pred_region
    _
  $region13: #{transformer_forward.35} parent=0 // pred_fallthru
    _
  %v15 = vld [vmem:[%s0] sm:$0xf]
  %v16 = vld [vmem:[%s0 + $0x4] sm:$0xf]
  %v17 = vld [vmem:[%s1] sm:$0xf]
  %v18 = vld [vmem:[%s1 + $0x4] sm:$0xf]
  %v19 = vld [vmem:[%s1 + $0x8] sm:$0xf]
  %v20 = vld [vmem:[%s1 + $0xc] sm:$0xf]
  %v21 = vld [vmem:[%s2] sm:$0x1]
  %v23 = vperm.slane %v21, 0
  %v27 = vunpack.c.l.b16 %v15
  %v28 = vunpack.c.l.b16 %v16
  %v29 = vpack.c.b16 %v28, %v27
  %v34 = vunpack.c.l.b16 %v17
  %v35 = vunpack.c.l.b16 %v18
  %v36 = vunpack.c.l.b16 %v19
  %v37 = vunpack.c.l.b16 %v20
  %v38 = vpack.c.b16 %v35, %v34
  %v39 = vpack.c.b16 %v37, %v36
  %vm42 = vcmask 261120
  %v44 = vsel %vm42, %v29, 0
  %46 = vmatpush.bf16.msra.mxu0 0
  %47 = vmatpush.bf16.msra.mxu0 0
  %48 = vmatpush.bf16.msra.mxu0 0
  %49 = vmatpush.bf16.msra.mxu0 0
  %50 = vmatpush.bf16.msra.mxu0 0
  %51 = vmatpush.bf16.msra.mxu0 0
  %52 = vmatpush.bf16.msra.mxu0 %v39
  %53 = vmatpush.bf16.msra.mxu0 %v38
  %54 = vmatmul.bf16.gmra.mxu0 %v44
  %v55 = vpop.f32.mrf.mxu0
  %v56 = vadd.f32 %v23, %v55
  %v57 = vpop.f32.mrf.mxu0
  %v58 = vadd.f32 %v23, %v57
  %59 = vdwg.mxu0
  %v60 = vpack.c.bf16 %v56, %v56
  %v61 = vpack.c.bf16 %v58, %v58
  %vm62 = vcmask 781312
  %63 = vst.msk [vmem:[%s3] sm:$0xf] %vm62, %v60
  %64 = vst.msk [vmem:[%s3 + $0x4] sm:$0xf] %vm62, %v61
  // Predicated region
  $region14: #{transformer_forward.35} parent=0 // pred_check
    _
  $region15: #{transformer_forward.35} parent=0 // pred_check_branch
    %66 = sbr.rel (0) target = $region17
  $region16: #{transformer_forward.35} parent=0 // pred_region
    _
  $region17: #{transformer_forward.35} parent=0 // pred_fallthru
    _
  // Predicated region
  $region18: #{transformer_forward.35} parent=0 // pred_check
    _
  $region19: #{transformer_forward.35} parent=0 // pred_check_branch
    %68 = sbr.rel (0) target = $region21
  $region20: #{transformer_forward.35} parent=0 // pred_region
    _
  $region21: #{transformer_forward.35} parent=0 // pred_fallthru
    _

// kernel: transformer_forward.38
$region0: #{transformer_forward.38}
  #allocation0 [shape = 'u32[]', space=smem, size = 0x4, offset = 0x4, fixed_abs, tag = 'smem constant byte address 0x4 - core index']
  #allocation1 [shape = 'u32[72,128]{1,0:T(1,128)}', space=vmem, size = 0x9000, scoped, tag = 'internal scratch']
  %s0 = inlined_call_operand.vmem [shape: bf16[16,32], index: 0, kind: input, shape index: {}]
  %s1 = inlined_call_operand.vmem [shape: bf16[16,32], index: 1, kind: input, shape index: {}]
  %s2 = inlined_call_operand.vmem [shape: f32[1,32], index: 2, kind: input, shape index: {}]
  %s3 = inlined_call_operand.vmem [shape: f32[1,32], index: 3, kind: input, shape index: {}]
  %s4 = inlined_call_operand.vmem [shape: bf16[16,32], index: 4, kind: output, shape index: {}]
  %s5 = sld [smem:[#allocation0]]
  $region26: #{transformer_forward.38} parent=0
    _
  %s7 = ssub.s32 1, %s5
  %s8 = scalar_select 0, %s7, %s5
  // Predicated region
  $region2: #{transformer_forward.38} parent=0 // pred_check
    _
  $region3: #{transformer_forward.38} parent=0 // pred_check_branch
    %10 = sbr.rel (0) target = $region5
  $region4: #{transformer_forward.38} parent=0 // pred_region
    _
  $region5: #{transformer_forward.38} parent=0 // pred_fallthru
    _
  // Predicated region
  $region6: #{transformer_forward.38} parent=0 // pred_check
    _
  $region7: #{transformer_forward.38} parent=0 // pred_check_branch
    %12 = sbr.rel (0) target = $region9
  $region8: #{transformer_forward.38} parent=0 // pred_region
    _
  $region9: #{transformer_forward.38} parent=0 // pred_fallthru
    _
  // Predicated region
  $region10: #{transformer_forward.38} parent=0 // pred_check
    _
  $region11: #{transformer_forward.38} parent=0 // pred_check_branch
    %14 = sbr.rel (0) target = $region13
  $region12: #{transformer_forward.38} parent=0 // pred_region
    _
  $region13: #{transformer_forward.38} parent=0 // pred_fallthru
    _
  // Predicated region
  $region14: #{transformer_forward.38} parent=0 // pred_check
    _
  $region15: #{transformer_forward.38} parent=0 // pred_check_branch
    %16 = sbr.rel (0) target = $region17
  $region16: #{transformer_forward.38} parent=0 // pred_region
    _
  $region17: #{transformer_forward.38} parent=0 // pred_fallthru
    _
  %v17 = vld [vmem:[%s0] sm:$0xf]
  %v18 = vld [vmem:[%s0 + $0x4] sm:$0xf]
  %v19 = vunpack.c.l.bf16 %v17
  %v20 = vunpack.c.l.bf16 %v18
  %v21 = vld [vmem:[%s1] sm:$0xf]
  %v22 = vld [vmem:[%s1 + $0x4] sm:$0xf]
  %v23 = vunpack.c.l.bf16 %v21
  %v24 = vunpack.c.l.bf16 %v22
  %v25 = vadd.f32 %v19, %v23
  %v26 = vadd.f32 %v20, %v24
  %vm27 = vcmask 261120
  %v28 = vsel %vm27, %v25, 0.0
  %29 = vadd.xlane.f32.xlu0 %v28
  %v30 = vpop.xlane.xlu0 %29
  %v31 = vsel %vm27, %v26, 0.0
  %32 = vadd.xlane.f32.xlu0 %v31
  %v33 = vpop.xlane.xlu0 %32
  %v34 = vrcp.pop 32.0
  %v35 = vmul.f32 32.0, %v34
  %v36 = vsub.f32 1.0, %v35
  %v37 = vmul.f32 %v34, %v36
  %v38 = vadd.f32 %v34, %v37
  %vm39 = vweird.f32 %v34
  %v40 = vsel %vm39, %v34, %v38
  %v41 = vmul.f32 %v30, %v40
  %v42 = vmul.f32 %v33, %v40
  %v43 = vsub.f32 %v25, %v41
  %v44 = vsub.f32 %v26, %v42
  %v45 = vmul.f32 %v43, %v43
  %v46 = vmul.f32 %v44, %v44
  %v47 = vsel %vm27, %v45, 0.0
  %48 = vadd.xlane.f32.xlu0 %v47
  %v49 = vpop.xlane.xlu0 %48
  %v50 = vsel %vm27, %v46, 0.0
  %51 = vadd.xlane.f32.xlu0 %v50
  %v52 = vpop.xlane.xlu0 %51
  %v53 = vmul.f32 %v49, %v40
  %v54 = vmul.f32 %v52, %v40
  %v55 = vadd.f32 %v53, 1e-05
  %v56 = vadd.f32 %v54, 1e-05
  %v57 = vrsqrt.pop %v55
  %v58 = vmul.f32 %v57, %v55
  %v59 = vmul.f32 %v58, %v57
  %v60 = vmul.f32 0.5, %v59
  %v61 = vsub.f32 1.5, %v60
  %v62 = vmul.f32 %v57, %v61
  %vm63 = vweird.f32 %v55
  %vm64 = vweird.f32 %v57
  %vm65 = vmor %vm63, %vm64
  %v66 = vsel %vm65, %v57, %v62
  %v67 = vrsqrt.pop %v56
  %v68 = vmul.f32 %v67, %v56
  %v69 = vmul.f32 %v68, %v67
  %v70 = vmul.f32 0.5, %v69
  %v71 = vsub.f32 1.5, %v70
  %v72 = vmul.f32 %v67, %v71
  %vm73 = vweird.f32 %v56
  %vm74 = vweird.f32 %v67
  %vm75 = vmor %vm73, %vm74
  %v76 = vsel %vm75, %v67, %v72
  %v77 = vmul.f32 %v43, %v66
  %v78 = vmul.f32 %v44, %v76
  %v79 = vld [vmem:[%s2] sm:$0x1]
  %v81 = vperm.slane %v79, 0
  %v83 = vmul.f32 %v77, %v81
  %v84 = vmul.f32 %v78, %v81
  %v85 = vld [vmem:[%s3] sm:$0x1]
  %v87 = vperm.slane %v85, 0
  %v89 = vadd.f32 %v83, %v87
  %v90 = vadd.f32 %v84, %v87
  %v91 = vpack.c.bf16 %v89, %v89
  %v92 = vpack.c.bf16 %v90, %v90
  %vm93 = vcmask 257024
  %94 = vst.msk [vmem:[%s4] sm:$0xf] %vm93, %v91
  %95 = vst.msk [vmem:[%s4 + $0x4] sm:$0xf] %vm93, %v92
  // Predicated region
  $region18: #{transformer_forward.38} parent=0 // pred_check
    _
  $region19: #{transformer_forward.38} parent=0 // pred_check_branch
    %97 = sbr.rel (0) target = $region21
  $region20: #{transformer_forward.38} parent=0 // pred_region
    _
  $region21: #{transformer_forward.38} parent=0 // pred_fallthru
    _
  // Predicated region
  $region22: #{transformer_forward.38} parent=0 // pred_check
    _
  $region23: #{transformer_forward.38} parent=0 // pred_check_branch
    %99 = sbr.rel (0) target = $region25
  $region24: #{transformer_forward.38} parent=0 // pred_region
    _
  $region25: #{transformer_forward.38} parent=0 // pred_fallthru
    _

// kernel: transformer_forward.36
$region0: #{transformer_forward.36}
  #allocation0 [shape = 'u32[]', space=smem, size = 0x4, offset = 0x4, fixed_abs, tag = 'smem constant byte address 0x4 - core index']
  #allocation1 [shape = 'u32[72,128]{1,0:T(1,128)}', space=vmem, size = 0x9000, scoped, tag = 'internal scratch']
  %s0 = inlined_call_operand.vmem [shape: bf16[2,8,96], index: 0, kind: input, shape index: {}]
  %s1 = inlined_call_operand.vmem [shape: bf16[2,8,32], index: 1, kind: output, shape index: {}]
  %s2 = sld [smem:[#allocation0]]
  $region37: #{transformer_forward.36} parent=0
    _
  %s4 = ssub.s32 1, %s2
  %s5 = scalar_select 0, %s4, %s2
  loop: start=0, step=1, limit=4
  $region2: #{transformer_forward.36} parent=0 // loop_pre_header
    _
  $region3: #{transformer_forward.36} parent=0 // loop_header
    %s7 = sphi 0, %s11
    %p8 = scmp.ge.s32.totalorder %s7, 4
    %s17 = sphi 0, %s19
    %s20 = sphi 0, %s17
    %s21 = sphi 0, %s20
    %s37 = sphi 0, %s21
    %s43 = sphi 0, %s45
    %s46 = sphi 0, %s43
    %s47 = sphi 0, %s46
    %s63 = sphi 0, %s47
  $region4: #{transformer_forward.36} parent=0 // loop_header_branch
    %10 = sbr.rel (%p8) target = $region8
  $region5: #{transformer_forward.36} parent=0 // loop_body
    %s12 = ssub.s32 %s7, 1
    %s13 = ssub.s32 %s7, 2
    %s14 = sadd.s32 %s7, 1
    %s15 = ssub.s32 %s7, %s14
    %p16 = scmp.eq.s32.totalorder %s15, 0
    %s18 = sadd.s32 %s17, 1
    %s19 = scalar_select %p16, %s17, %s18
    %p22 = pneg %p16
    %p23 = scmp.eq.s32.totalorder %s7, 1
    %p24 = por %p22, %p23
    %p25 = scmp.ne.s32.totalorder %s17, %s20
    %p26 = scmp.eq.s32.totalorder %s7, 0
    %p27 = por %p25, %p26
    %p28 = scmp.ne.s32.totalorder %s17, %s20
    %p29 = scmp.eq.s32.totalorder %s12, 1
    %p30 = por %p28, %p29
    %p31 = scmp.ne.s32.totalorder %s20, %s21
    %p32 = scmp.eq.s32.totalorder %s12, 0
    %p33 = por %p31, %p32
    %p34 = scmp.ne.s32.totalorder %s20, %s21
    %p35 = scmp.eq.s32.totalorder %s13, 1
    %p36 = por %p34, %p35
    %p38 = scmp.ne.s32.totalorder %s21, %s37
    %p39 = scmp.eq.s32.totalorder %s13, 0
    %p40 = por %p38, %p39
    %s41 = ssub.s32 %s7, %s14
    %p42 = scmp.eq.s32.totalorder %s41, 0
    %s44 = sadd.s32 %s43, 1
    %s45 = scalar_select %p42, %s43, %s44
    %p48 = pneg %p42
    %p49 = scmp.eq.s32.totalorder %s7, 1
    %p50 = por %p48, %p49
    %p51 = scmp.ne.s32.totalorder %s43, %s46
    %p52 = scmp.eq.s32.totalorder %s7, 0
    %p53 = por %p51, %p52
    %p54 = scmp.ne.s32.totalorder %s43, %s46
    %p55 = scmp.eq.s32.totalorder %s12, 1
    %p56 = por %p54, %p55
    %p57 = scmp.ne.s32.totalorder %s46, %s47
    %p58 = scmp.eq.s32.totalorder %s12, 0
    %p59 = por %p57, %p58
    %p60 = scmp.ne.s32.totalorder %s46, %s47
    %p61 = scmp.eq.s32.totalorder %s13, 1
    %p62 = por %p60, %p61
    %p64 = scmp.ne.s32.totalorder %s47, %s63
    %p65 = scmp.eq.s32.totalorder %s13, 0
    %p66 = por %p64, %p65
    %p67 = scmp.le.s32.totalorder 1, %s7
    %p68 = scmp.lt.s32.totalorder %s7, 3
    %p69 = pnand %p67, %p68
    %p70 = pneg %p69
    // Predicated region
    $region9: #{transformer_forward.36} parent=5 // pred_check
      _
    $region10: #{transformer_forward.36} parent=5 // pred_check_branch
      %72 = sbr.rel (%p69) target = $region12
    $region11: #{transformer_forward.36} parent=5 // pred_region
      %s73 = ssub.s32 %s7, 1
    $region12: #{transformer_forward.36} parent=5 // pred_fallthru
      _
    %p74 = scmp.lt.s32.totalorder %s7, 2
    // Predicated region
    $region13: #{transformer_forward.36} parent=5 // pred_check
      %p75 = pneg %p74
    $region14: #{transformer_forward.36} parent=5 // pred_check_branch
      %77 = sbr.rel (%p75) target = $region16
    $region15: #{transformer_forward.36} parent=5 // pred_region
      // Predicated region
      $region17: #{transformer_forward.36} parent=15 // pred_check
        %p78 = pneg %p27
      $region18: #{transformer_forward.36} parent=15 // pred_check_branch
        %80 = sbr.rel (%p78) target = $region20
      $region19: #{transformer_forward.36} parent=15 // pred_region
        %p81 = scmp.lt.s32.totalorder %s7, 1
        %s82 = scalar_select %p81, %s7, 1
        %s83 = smul.addr %s82, 4
        %s84 = scalar_lea.vmem %s0, %s83
      $region20: #{transformer_forward.36} parent=15 // pred_fallthru
        _
    $region16: #{transformer_forward.36} parent=5 // pred_fallthru
      _
    %p85 = scmp.le.s32.totalorder 1, %s7
    %p86 = scmp.lt.s32.totalorder %s7, 3
    %p87 = pnand %p85, %p86
    %p88 = pneg %p87
    // Predicated region
    $region21: #{transformer_forward.36} parent=5 // pred_check
      _
    $region22: #{transformer_forward.36} parent=5 // pred_check_branch
      %90 = sbr.rel (%p87) target = $region24
    $region23: #{transformer_forward.36} parent=5 // pred_region
      %s91 = ssub.s32 %s7, 1
      %p92 = scmp.lt.s32.totalorder %s12, 1
      %s93 = scalar_select %p92, %s12, 1
      %s94 = smul.addr %s93, 4
      %s95 = scalar_lea.vmem %s0, %s94
      %p96 = pneg %p33
      %p97 = pneg %p30
      %p98 = pneg %p59
      %p99 = pneg %p56
      %p100 = scmp.lt.s32.totalorder %s12, 1
      %s101 = scalar_select %p100, %s12, 1
      %s102 = smul.addr %s101, 4
      %s103 = scalar_lea.vmem %s1, %s102
      %p104 = scmp.lt.s32.totalorder %s12, 1
      %s105 = scalar_select %p104, %s12, 1
      %s106 = smul.addr %s105, 4
      %s107 = scalar_lea.vmem %s0, %s106
      %p108 = scmp.lt.s32.totalorder %s12, 1
      %s109 = scalar_select %p108, %s12, 1
      %s110 = smul.addr %s109, 4
      %s111 = scalar_lea.vmem %s1, %s110
      %v113 = vld [vmem:[%s107] sm:$0xf]
      %v114 = vunpack.c.l.bf16 %v113
      %v115 = vmul.f32 %v114, 0.35355338
      %v116 = vpack.c.bf16 %v115, %v115
      %v118 = vunpack.c.l.b16 %v113
      %v119 = vpack.c.b16 %v118, %v118
      %120 = vrot.lane.b32.xlu0 %v119, 96
      %v121 = vpop.permute.xlu0 %120
      %vm122 = vcmask 64512
      %v124 = vsel %vm122, %v116, 0
      %v127 = vsel %vm122, %v121, 0
      %129 = vmatpush.bf16.xpose.msra.mxu0 0
      %130 = vmatpush.bf16.xpose.msra.mxu0 0
      %131 = vmatpush.bf16.xpose.msra.mxu0 0
      %132 = vmatpush.bf16.xpose.msra.mxu0 0
      %133 = vmatpush.bf16.xpose.msra.mxu0 0
      %134 = vmatpush.bf16.xpose.msra.mxu0 0
      %135 = vmatpush.bf16.xpose.msra.mxu0 0
      %136 = vmatpush.bf16.xpose.msra.mxu0 %v127
      %137 = vmatmul.bf16.gmra.mxu0 %v124
      %v138 = vpop.f32.mrf.mxu0
      %v139 = vadd.f32 0.0, %v138
      %v140 = vpop.f32.mrf.mxu0
      %141 = vdwg.mxu0
      %v142 = vsel %vm122, %v139, -inf
      %143 = vmax.xlane.f32.xlu0 %v142
      %v144 = vpop.xlane.xlu0 %143
      %v145 = vsub.f32 %v139, %v144
      %v146 = vmul.f32 %v145, 1.442695
      %v147 = vpow.pop %v146
      %v148 = vsel %vm122, %v147, 0.0
      %149 = vadd.xlane.f32.xlu0 %v148
      %v150 = vpop.xlane.xlu0 %149
      %v151 = vrcp.pop %v150
      %v152 = vmul.f32 %v147, %v151
      %v153 = vpack.c.bf16 %v152, %v152
      %154 = vrot.lane.b32.xlu0 %v119, 64
      %v155 = vpop.permute.xlu0 %154
      %v157 = vsel %vm122, %v153, 0
      %vm159 = vcmask 1043456
      %v161 = vsel %vm159, %v155, 0
      %163 = vmatpush.bf16.msra.mxu0 0
      %164 = vmatpush.bf16.msra.mxu0 0
      %165 = vmatpush.bf16.msra.mxu0 0
      %166 = vmatpush.bf16.msra.mxu0 0
      %167 = vmatpush.bf16.msra.mxu0 0
      %168 = vmatpush.bf16.msra.mxu0 0
      %169 = vmatpush.bf16.msra.mxu0 0
      %170 = vmatpush.bf16.msra.mxu0 %v161
      %171 = vmatmul.bf16.gmra.mxu0 %v157
      %v172 = vpop.f32.mrf.mxu0
      %v173 = vadd.f32 0.0, %v172
      %v174 = vpop.f32.mrf.mxu0
      %175 = vdwg.mxu0
      %177 = vrot.lane.b32.xlu0 %v116, 120
      %v178 = vpop.permute.xlu0 %177
      %179 = vrot.lane.b32.xlu0 %v119, 88
      %v180 = vpop.permute.xlu0 %179
      %v182 = vsel %vm122, %v178, 0
      %v185 = vsel %vm122, %v180, 0
      %187 = vmatpush.bf16.xpose.msra.mxu0 0
      %188 = vmatpush.bf16.xpose.msra.mxu0 0
      %189 = vmatpush.bf16.xpose.msra.mxu0 0
      %190 = vmatpush.bf16.xpose.msra.mxu0 0
      %191 = vmatpush.bf16.xpose.msra.mxu0 0
      %192 = vmatpush.bf16.xpose.msra.mxu0 0
      %193 = vmatpush.bf16.xpose.msra.mxu0 0
      %194 = vmatpush.bf16.xpose.msra.mxu0 %v185
      %195 = vmatmul.bf16.gmra.mxu0 %v182
      %v196 = vpop.f32.mrf.mxu0
      %v197 = vadd.f32 0.0, %v196
      %v198 = vpop.f32.mrf.mxu0
      %199 = vdwg.mxu0
      %v200 = vsel %vm122, %v197, -inf
      %201 = vmax.xlane.f32.xlu0 %v200
      %v202 = vpop.xlane.xlu0 %201
      %v203 = vsub.f32 %v197, %v202
      %v204 = vmul.f32 %v203, 1.442695
      %v205 = vpow.pop %v204
      %v206 = vsel %vm122, %v205, 0.0
      %207 = vadd.xlane.f32.xlu0 %v206
      %v208 = vpop.xlane.xlu0 %207
      %v209 = vrcp.pop %v208
      %v210 = vmul.f32 %v205, %v209
      %v211 = vpack.c.bf16 %v210, %v210
      %212 = vrot.lane.b32.xlu0 %v119, 56
      %v213 = vpop.permute.xlu0 %212
      %v215 = vsel %vm122, %v211, 0
      %v218 = vsel %vm159, %v213, 0
      %220 = vmatpush.bf16.msra.mxu0 0
      %221 = vmatpush.bf16.msra.mxu0 0
      %222 = vmatpush.bf16.msra.mxu0 0
      %223 = vmatpush.bf16.msra.mxu0 0
      %224 = vmatpush.bf16.msra.mxu0 0
      %225 = vmatpush.bf16.msra.mxu0 0
      %226 = vmatpush.bf16.msra.mxu0 0
      %227 = vmatpush.bf16.msra.mxu0 %v218
      %228 = vmatmul.bf16.gmra.mxu0 %v215
      %v229 = vpop.f32.mrf.mxu0
      %v230 = vadd.f32 0.0, %v229
      %v231 = vpop.f32.mrf.mxu0
      %232 = vdwg.mxu0
      %233 = vrot.lane.b32.xlu0 %v116, 112
      %v234 = vpop.permute.xlu0 %233
      %235 = vrot.lane.b32.xlu0 %v119, 80
      %v236 = vpop.permute.xlu0 %235
      %v238 = vsel %vm122, %v234, 0
      %v241 = vsel %vm122, %v236, 0
      %243 = vmatpush.bf16.xpose.msra.mxu0 0
      %244 = vmatpush.bf16.xpose.msra.mxu0 0
      %245 = vmatpush.bf16.xpose.msra.mxu0 0
      %246 = vmatpush.bf16.xpose.msra.mxu0 0
      %247 = vmatpush.bf16.xpose.msra.mxu0 0
      %248 = vmatpush.bf16.xpose.msra.mxu0 0
      %249 = vmatpush.bf16.xpose.msra.mxu0 0
      %250 = vmatpush.bf16.xpose.msra.mxu0 %v241
      %251 = vmatmul.bf16.gmra.mxu0 %v238
      %v252 = vpop.f32.mrf.mxu0
      %v253 = vadd.f32 0.0, %v252
      %v254 = vpop.f32.mrf.mxu0
      %255 = vdwg.mxu0
      %v256 = vsel %vm122, %v253, -inf
      %257 = vmax.xlane.f32.xlu0 %v256
      %v258 = vpop.xlane.xlu0 %257
      %v259 = vsub.f32 %v253, %v258
      %v260 = vmul.f32 %v259, 1.442695
      %v261 = vpow.pop %v260
      %v262 = vsel %vm122, %v261, 0.0
      %263 = vadd.xlane.f32.xlu0 %v262
      %v264 = vpop.xlane.xlu0 %263
      %v265 = vrcp.pop %v264
      %v266 = vmul.f32 %v261, %v265
      %v267 = vpack.c.bf16 %v266, %v266
      %268 = vrot.lane.b32.xlu0 %v119, 48
      %v269 = vpop.permute.xlu0 %268
      %v271 = vsel %vm122, %v267, 0
      %v274 = vsel %vm159, %v269, 0
      %276 = vmatpush.bf16.msra.mxu0 0
      %277 = vmatpush.bf16.msra.mxu0 0
      %278 = vmatpush.bf16.msra.mxu0 0
      %279 = vmatpush.bf16.msra.mxu0 0
      %280 = vmatpush.bf16.msra.mxu0 0
      %281 = vmatpush.bf16.msra.mxu0 0
      %282 = vmatpush.bf16.msra.mxu0 0
      %283 = vmatpush.bf16.msra.mxu0 %v274
      %284 = vmatmul.bf16.gmra.mxu0 %v271
      %v285 = vpop.f32.mrf.mxu0
      %v286 = vadd.f32 0.0, %v285
      %v287 = vpop.f32.mrf.mxu0
      %288 = vdwg.mxu0
      %289 = vrot.lane.b32.xlu0 %v116, 104
      %v290 = vpop.permute.xlu0 %289
      %291 = vrot.lane.b32.xlu0 %v119, 72
      %v292 = vpop.permute.xlu0 %291
      %v294 = vsel %vm122, %v290, 0
      %v297 = vsel %vm122, %v292, 0
      %299 = vmatpush.bf16.xpose.msra.mxu0 0
      %300 = vmatpush.bf16.xpose.msra.mxu0 0
      %301 = vmatpush.bf16.xpose.msra.mxu0 0
      %302 = vmatpush.bf16.xpose.msra.mxu0 0
      %303 = vmatpush.bf16.xpose.msra.mxu0 0
      %304 = vmatpush.bf16.xpose.msra.mxu0 0
      %305 = vmatpush.bf16.xpose.msra.mxu0 0
      %306 = vmatpush.bf16.xpose.msra.mxu0 %v297
      %307 = vmatmul.bf16.gmra.mxu0 %v294
      %v308 = vpop.f32.mrf.mxu0
      %v309 = vadd.f32 0.0, %v308
      %v310 = vpop.f32.mrf.mxu0
      %311 = vdwg.mxu0
      %v312 = vsel %vm122, %v309, -inf
      %313 = vmax.xlane.f32.xlu0 %v312
      %v314 = vpop.xlane.xlu0 %313
      %v315 = vsub.f32 %v309, %v314
      %v316 = vmul.f32 %v315, 1.442695
      %v317 = vpow.pop %v316
      %v318 = vsel %vm122, %v317, 0.0
      %319 = vadd.xlane.f32.xlu0 %v318
      %v320 = vpop.xlane.xlu0 %319
      %v321 = vrcp.pop %v320
      %v322 = vmul.f32 %v317, %v321
      %v323 = vpack.c.bf16 %v322, %v322
      %324 = vrot.lane.b32.xlu0 %v119, 40
      %v325 = vpop.permute.xlu0 %324
      %v327 = vsel %vm122, %v323, 0
      %v330 = vsel %vm159, %v325, 0
      %332 = vmatpush.bf16.msra.mxu0 0
      %333 = vmatpush.bf16.msra.mxu0 0
      %334 = vmatpush.bf16.msra.mxu0 0
      %335 = vmatpush.bf16.msra.mxu0 0
      %336 = vmatpush.bf16.msra.mxu0 0
      %337 = vmatpush.bf16.msra.mxu0 0
      %338 = vmatpush.bf16.msra.mxu0 0
      %339 = vmatpush.bf16.msra.mxu0 %v330
      %340 = vmatmul.bf16.gmra.mxu0 %v327
      %v341 = vpop.f32.mrf.mxu0
      %v342 = vadd.f32 0.0, %v341
      %v343 = vpop.f32.mrf.mxu0
      %344 = vdwg.mxu0
      %346 = vrot.lane.b32.xlu0 %v230, 8
      %v347 = vpop.permute.xlu0 %346
      %350 = vrot.lane.b32.xlu0 %v286, 16
      %v351 = vpop.permute.xlu0 %350
      %354 = vrot.lane.b32.xlu0 %v342, 24
      %v355 = vpop.permute.xlu0 %354
      %v357 = vsel %vm122, %v173, %v347
      %vm358 = vcmask 130048
      %v359 = vsel %vm358, %v357, %v351
      %vm360 = vcmask 195584
      %v361 = vsel %vm360, %v359, %v355
      %v362 = vpack.c.bf16 %v361, %v361
      %vm363 = vcmask 257024
      %364 = vst.msk [vmem:[%s111] sm:$0xf] %vm363, %v362
      %p365 = scmp.lt.s32.totalorder %s12, 1
      %s366 = scalar_select %p365, %s12, 1
      %s367 = smul.addr %s366, 4
      %s368 = scalar_lea.vmem %s1, %s367
      // Predicated region
      $region25: #{transformer_forward.36} parent=23 // pred_check
        %p369 = pneg %p56
      $region26: #{transformer_forward.36} parent=23 // pred_check_branch
        %371 = sbr.rel (%p369) target = $region28
      $region27: #{transformer_forward.36} parent=23 // pred_region
        _
      $region28: #{transformer_forward.36} parent=23 // pred_fallthru
        _
    $region24: #{transformer_forward.36} parent=5 // pred_fallthru
      _
    %p372 = scmp.le.s32.totalorder 2, %s7
    // Predicated region
    $region29: #{transformer_forward.36} parent=5 // pred_check
      %p373 = pneg %p372
    $region30: #{transformer_forward.36} parent=5 // pred_check_branch
      %375 = sbr.rel (%p373) target = $region32
    $region31: #{transformer_forward.36} parent=5 // pred_region
      %s376 = ssub.s32 %s7, 2
      // Predicated region
      $region33: #{transformer_forward.36} parent=31 // pred_check
        %p377 = pneg %p62
      $region34: #{transformer_forward.36} parent=31 // pred_check_branch
        %379 = sbr.rel (%p377) target = $region36
      $region35: #{transformer_forward.36} parent=31 // pred_region
        %p380 = scmp.lt.s32.totalorder %s13, 1
        %s381 = scalar_select %p380, %s13, 1
        %s382 = smul.addr %s381, 4
        %s383 = scalar_lea.vmem %s1, %s382
      $region36: #{transformer_forward.36} parent=31 // pred_fallthru
        _
    $region32: #{transformer_forward.36} parent=5 // pred_fallthru
      _
  $region6: #{transformer_forward.36} parent=0 // loop_footer
    %s11 = sadd.s32 1, %s7
  $region7: #{transformer_forward.36} parent=0 // loop_footer_branch
    %6 = sbr.rel target = $region3
  $region8: #{transformer_forward.36} parent=0 // loop_exit
    _

// kernel: transformer_forward.52
$region0: #{transformer_forward.52}
  #allocation0 [shape = 'u32[]', space=smem, size = 0x4, offset = 0x4, fixed_abs, tag = 'smem constant byte address 0x4 - core index']
  #allocation1 [shape = 'u32[72,128]{1,0:T(1,128)}', space=vmem, size = 0x9000, scoped, tag = 'internal scratch']
  %s0 = inlined_call_operand.vmem [shape: bf16[16,32], index: 0, kind: input, shape index: {}]
  %s1 = inlined_call_operand.vmem [shape: bf16[32,64], index: 1, kind: input, shape index: {}]
  %s2 = inlined_call_operand.vmem [shape: f32[1,64], index: 2, kind: input, shape index: {}]
  %s3 = inlined_call_operand.vmem [shape: bf16[16,64], index: 3, kind: output, shape index: {}]
  %s4 = sld [smem:[#allocation0]]
  $region22: #{transformer_forward.52} parent=0
    _
  %s6 = ssub.s32 1, %s4
  %s7 = scalar_select 0, %s6, %s4
  // Predicated region
  $region2: #{transformer_forward.52} parent=0 // pred_check
    _
  $region3: #{transformer_forward.52} parent=0 // pred_check_branch
    %9 = sbr.rel (0) target = $region5
  $region4: #{transformer_forward.52} parent=0 // pred_region
    _
  $region5: #{transformer_forward.52} parent=0 // pred_fallthru
    _
  // Predicated region
  $region6: #{transformer_forward.52} parent=0 // pred_check
    _
  $region7: #{transformer_forward.52} parent=0 // pred_check_branch
    %11 = sbr.rel (0) target = $region9
  $region8: #{transformer_forward.52} parent=0 // pred_region
    _
  $region9: #{transformer_forward.52} parent=0 // pred_fallthru
    _
  // Predicated region
  $region10: #{transformer_forward.52} parent=0 // pred_check
    _
  $region11: #{transformer_forward.52} parent=0 // pred_check_branch
    %13 = sbr.rel (0) target = $region13
  $region12: #{transformer_forward.52} parent=0 // pred_region
    _
  $region13: #{transformer_forward.52} parent=0 // pred_fallthru
    _
  %v15 = vld [vmem:[%s0] sm:$0xf]
  %v16 = vld [vmem:[%s0 + $0x4] sm:$0xf]
  %v17 = vld [vmem:[%s1] sm:$0xf]
  %v18 = vld [vmem:[%s1 + $0x4] sm:$0xf]
  %v19 = vld [vmem:[%s1 + $0x8] sm:$0xf]
  %v20 = vld [vmem:[%s1 + $0xc] sm:$0xf]
  %v21 = vld [vmem:[%s2] sm:$0x1]
  %v23 = vperm.slane %v21, 0
  %v27 = vunpack.c.l.b16 %v15
  %v28 = vunpack.c.l.b16 %v16
  %v29 = vpack.c.b16 %v28, %v27
  %v34 = vunpack.c.l.b16 %v17
  %v35 = vunpack.c.l.b16 %v18
  %v36 = vunpack.c.l.b16 %v19
  %v37 = vunpack.c.l.b16 %v20
  %v38 = vpack.c.b16 %v35, %v34
  %v39 = vpack.c.b16 %v37, %v36
  %vm42 = vcmask 261120
  %v44 = vsel %vm42, %v29, 0
  %46 = vmatpush.bf16.msra.mxu0 0
  %47 = vmatpush.bf16.msra.mxu0 0
  %48 = vmatpush.bf16.msra.mxu0 0
  %49 = vmatpush.bf16.msra.mxu0 0
  %50 = vmatpush.bf16.msra.mxu0 0
  %51 = vmatpush.bf16.msra.mxu0 0
  %52 = vmatpush.bf16.msra.mxu0 %v39
  %53 = vmatpush.bf16.msra.mxu0 %v38
  %54 = vmatmul.bf16.gmra.mxu0 %v44
  %v55 = vpop.f32.mrf.mxu0
  %v56 = vadd.f32 %v23, %v55
  %v57 = vpop.f32.mrf.mxu0
  %v58 = vadd.f32 %v23, %v57
  %59 = vdwg.mxu0
  %v60 = vpack.c.bf16 %v56, %v56
  %v61 = vpack.c.bf16 %v58, %v58
  %vm62 = vcmask 519168
  %63 = vst.msk [vmem:[%s3] sm:$0xf] %vm62, %v60
  %64 = vst.msk [vmem:[%s3 + $0x4] sm:$0xf] %vm62, %v61
  // Predicated region
  $region14: #{transformer_forward.52} parent=0 // pred_check
    _
  $region15: #{transformer_forward.52} parent=0 // pred_check_branch
    %66 = sbr.rel (0) target = $region17
  $region16: #{transformer_forward.52} parent=0 // pred_region
    _
  $region17: #{transformer_forward.52} parent=0 // pred_fallthru
    _
  // Predicated region
  $region18: #{transformer_forward.52} parent=0 // pred_check
    _
  $region19: #{transformer_forward.52} parent=0 // pred_check_branch
    %68 = sbr.rel (0) target = $region21
  $region20: #{transformer_forward.52} parent=0 // pred_region
    _
  $region21: #{transformer_forward.52} parent=0 // pred_fallthru
    _

// kernel: transformer_forward.39
$region0: #{transformer_forward.39}
  #allocation0 [shape = 'u32[]', space=smem, size = 0x4, offset = 0x4, fixed_abs, tag = 'smem constant byte address 0x4 - core index']
  #allocation1 [shape = 'u32[72,128]{1,0:T(1,128)}', space=vmem, size = 0x9000, scoped, tag = 'internal scratch']
  %s0 = inlined_call_operand.vmem [shape: bf16[16,32], index: 0, kind: input, shape index: {}]
  %s1 = inlined_call_operand.vmem [shape: bf16[32,64], index: 1, kind: input, shape index: {}]
  %s2 = inlined_call_operand.vmem [shape: f32[1,64], index: 2, kind: input, shape index: {}]
  %s3 = inlined_call_operand.vmem [shape: bf16[64,32], index: 3, kind: input, shape index: {}]
  %s4 = inlined_call_operand.vmem [shape: f32[1,32], index: 4, kind: input, shape index: {}]
  %s5 = inlined_call_operand.vmem [shape: bf16[16,32], index: 5, kind: output, shape index: {}]
  %s6 = sld [smem:[#allocation0]]
  $region30: #{transformer_forward.39} parent=0
    _
  %s8 = ssub.s32 1, %s6
  %s9 = scalar_select 0, %s8, %s6
  // Predicated region
  $region2: #{transformer_forward.39} parent=0 // pred_check
    _
  $region3: #{transformer_forward.39} parent=0 // pred_check_branch
    %11 = sbr.rel (0) target = $region5
  $region4: #{transformer_forward.39} parent=0 // pred_region
    _
  $region5: #{transformer_forward.39} parent=0 // pred_fallthru
    _
  // Predicated region
  $region6: #{transformer_forward.39} parent=0 // pred_check
    _
  $region7: #{transformer_forward.39} parent=0 // pred_check_branch
    %13 = sbr.rel (0) target = $region9
  $region8: #{transformer_forward.39} parent=0 // pred_region
    _
  $region9: #{transformer_forward.39} parent=0 // pred_fallthru
    _
  // Predicated region
  $region10: #{transformer_forward.39} parent=0 // pred_check
    _
  $region11: #{transformer_forward.39} parent=0 // pred_check_branch
    %15 = sbr.rel (0) target = $region13
  $region12: #{transformer_forward.39} parent=0 // pred_region
    _
  $region13: #{transformer_forward.39} parent=0 // pred_fallthru
    _
  // Predicated region
  $region14: #{transformer_forward.39} parent=0 // pred_check
    _
  $region15: #{transformer_forward.39} parent=0 // pred_check_branch
    %17 = sbr.rel (0) target = $region17
  $region16: #{transformer_forward.39} parent=0 // pred_region
    _
  $region17: #{transformer_forward.39} parent=0 // pred_fallthru
    _
  // Predicated region
  $region18: #{transformer_forward.39} parent=0 // pred_check
    _
  $region19: #{transformer_forward.39} parent=0 // pred_check_branch
    %19 = sbr.rel (0) target = $region21
  $region20: #{transformer_forward.39} parent=0 // pred_region
    _
  $region21: #{transformer_forward.39} parent=0 // pred_fallthru
    _
  %v21 = vld [vmem:[%s0] sm:$0xf]
  %v22 = vld [vmem:[%s0 + $0x4] sm:$0xf]
  %v23 = vld [vmem:[%s1] sm:$0xf]
  %v24 = vld [vmem:[%s1 + $0x4] sm:$0xf]
  %v25 = vld [vmem:[%s1 + $0x8] sm:$0xf]
  %v26 = vld [vmem:[%s1 + $0xc] sm:$0xf]
  %v27 = vld [vmem:[%s2] sm:$0x1]
  %v29 = vperm.slane %v27, 0
  %v33 = vunpack.c.l.b16 %v21
  %v34 = vunpack.c.l.b16 %v22
  %v35 = vpack.c.b16 %v34, %v33
  %v40 = vunpack.c.l.b16 %v23
  %v41 = vunpack.c.l.b16 %v24
  %v42 = vunpack.c.l.b16 %v25
  %v43 = vunpack.c.l.b16 %v26
  %v44 = vpack.c.b16 %v41, %v40
  %v45 = vpack.c.b16 %v43, %v42
  %vm48 = vcmask 261120
  %v50 = vsel %vm48, %v35, 0
  %52 = vmatpush.bf16.msra.mxu0 0
  %53 = vmatpush.bf16.msra.mxu0 0
  %54 = vmatpush.bf16.msra.mxu0 0
  %55 = vmatpush.bf16.msra.mxu0 0
  %56 = vmatpush.bf16.msra.mxu0 0
  %57 = vmatpush.bf16.msra.mxu0 0
  %58 = vmatpush.bf16.msra.mxu0 %v45
  %59 = vmatpush.bf16.msra.mxu0 %v44
  %60 = vmatmul.bf16.gmra.mxu0 %v50
  %v61 = vpop.f32.mrf.mxu0
  %v62 = vadd.f32 %v29, %v61
  %v63 = vpop.f32.mrf.mxu0
  %v64 = vadd.f32 %v29, %v63
  %65 = vdwg.mxu0
  %v66 = vmax.f32 %v62, 0.0
  %v67 = vmax.f32 %v64, 0.0
  %v68 = vpack.c.bf16 %v67, %v66
  %v69 = vld [vmem:[%s3] sm:$0xf]
  %v70 = vld [vmem:[%s3 + $0x4] sm:$0xf]
  %v71 = vld [vmem:[%s3 + $0x8] sm:$0xf]
  %v72 = vld [vmem:[%s3 + $0xc] sm:$0xf]
  %v73 = vld [vmem:[%s3 + $0x10] sm:$0xf]
  %v74 = vld [vmem:[%s3 + $0x14] sm:$0xf]
  %v75 = vld [vmem:[%s3 + $0x18] sm:$0xf]
  %v76 = vld [vmem:[%s3 + $0x1c] sm:$0xf]
  %v77 = vld [vmem:[%s4] sm:$0x1]
  %v79 = vperm.slane %v77, 0
  %v89 = vunpack.c.l.b16 %v69
  %v90 = vunpack.c.l.b16 %v70
  %v91 = vunpack.c.l.b16 %v71
  %v92 = vunpack.c.l.b16 %v72
  %v93 = vunpack.c.l.b16 %v73
  %v94 = vunpack.c.l.b16 %v74
  %v95 = vunpack.c.l.b16 %v75
  %v96 = vunpack.c.l.b16 %v76
  %v97 = vpack.c.b16 %v90, %v89
  %v98 = vpack.c.b16 %v92, %v91
  %v99 = vpack.c.b16 %v94, %v93
  %v100 = vpack.c.b16 %v96, %v95
  %vm105 = vcmask 523264
  %v107 = vsel %vm105, %v68, 0
  %109 = vmatpush.bf16.msra.mxu0 0
  %110 = vmatpush.bf16.msra.mxu0 0
  %111 = vmatpush.bf16.msra.mxu0 0
  %112 = vmatpush.bf16.msra.mxu0 0
  %113 = vmatpush.bf16.msra.mxu0 %v100
  %114 = vmatpush.bf16.msra.mxu0 %v99
  %115 = vmatpush.bf16.msra.mxu0 %v98
  %116 = vmatpush.bf16.msra.mxu0 %v97
  %117 = vmatmul.bf16.gmra.mxu0 %v107
  %v118 = vpop.f32.mrf.mxu0
  %v119 = vadd.f32 %v79, %v118
  %v120 = vpop.f32.mrf.mxu0
  %v121 = vadd.f32 %v79, %v120
  %122 = vdwg.mxu0
  %v123 = vpack.c.bf16 %v119, %v119
  %v124 = vpack.c.bf16 %v121, %v121
  %vm125 = vcmask 257024
  %126 = vst.msk [vmem:[%s5] sm:$0xf] %vm125, %v123
  %127 = vst.msk [vmem:[%s5 + $0x4] sm:$0xf] %vm125, %v124
  // Predicated region
  $region22: #{transformer_forward.39} parent=0 // pred_check
    _
  $region23: #{transformer_forward.39} parent=0 // pred_check_branch
    %129 = sbr.rel (0) target = $region25
  $region24: #{transformer_forward.39} parent=0 // pred_region
    _
  $region25: #{transformer_forward.39} parent=0 // pred_fallthru
    _
  // Predicated region
  $region26: #{transformer_forward.39} parent=0 // pred_check
    _
  $region27: #{transformer_forward.39} parent=0 // pred_check_branch
    %131 = sbr.rel (0) target = $region29
  $region28: #{transformer_forward.39} parent=0 // pred_region
    _
  $region29: #{transformer_forward.39} parent=0 // pred_fallthru
    _

// kernel: transformer_forward.48
$region0: #{transformer_forward.48}
  #allocation0 [shape = 'u32[]', space=smem, size = 0x4, offset = 0x4, fixed_abs, tag = 'smem constant byte address 0x4 - core index']
  #allocation1 [shape = 'u32[72,128]{1,0:T(1,128)}', space=vmem, size = 0x9000, scoped, tag = 'internal scratch']
  %s0 = inlined_call_operand.vmem [shape: bf16[2,8,96], index: 0, kind: input, shape index: {}]
  %s1 = inlined_call_operand.vmem [shape: bf16[2,8,32], index: 1, kind: output, shape index: {}]
  %s2 = sld [smem:[#allocation0]]
  $region37: #{transformer_forward.48} parent=0
    _
  %s4 = ssub.s32 1, %s2
  %s5 = scalar_select 0, %s4, %s2
  loop: start=0, step=1, limit=4
  $region2: #{transformer_forward.48} parent=0 // loop_pre_header
    _
  $region3: #{transformer_forward.48} parent=0 // loop_header
    %s7 = sphi 0, %s11
    %p8 = scmp.ge.s32.totalorder %s7, 4
    %s17 = sphi 0, %s19
    %s20 = sphi 0, %s17
    %s21 = sphi 0, %s20
    %s37 = sphi 0, %s21
    %s43 = sphi 0, %s45
    %s46 = sphi 0, %s43
    %s47 = sphi 0, %s46
    %s63 = sphi 0, %s47
  $region4: #{transformer_forward.48} parent=0 // loop_header_branch
    %10 = sbr.rel (%p8) target = $region8
  $region5: #{transformer_forward.48} parent=0 // loop_body
    %s12 = ssub.s32 %s7, 1
    %s13 = ssub.s32 %s7, 2
    %s14 = sadd.s32 %s7, 1
    %s15 = ssub.s32 %s7, %s14
    %p16 = scmp.eq.s32.totalorder %s15, 0
    %s18 = sadd.s32 %s17, 1
    %s19 = scalar_select %p16, %s17, %s18
    %p22 = pneg %p16
    %p23 = scmp.eq.s32.totalorder %s7, 1
    %p24 = por %p22, %p23
    %p25 = scmp.ne.s32.totalorder %s17, %s20
    %p26 = scmp.eq.s32.totalorder %s7, 0
    %p27 = por %p25, %p26
    %p28 = scmp.ne.s32.totalorder %s17, %s20
    %p29 = scmp.eq.s32.totalorder %s12, 1
    %p30 = por %p28, %p29
    %p31 = scmp.ne.s32.totalorder %s20, %s21
    %p32 = scmp.eq.s32.totalorder %s12, 0
    %p33 = por %p31, %p32
    %p34 = scmp.ne.s32.totalorder %s20, %s21
    %p35 = scmp.eq.s32.totalorder %s13, 1
    %p36 = por %p34, %p35
    %p38 = scmp.ne.s32.totalorder %s21, %s37
    %p39 = scmp.eq.s32.totalorder %s13, 0
    %p40 = por %p38, %p39
    %s41 = ssub.s32 %s7, %s14
    %p42 = scmp.eq.s32.totalorder %s41, 0
    %s44 = sadd.s32 %s43, 1
    %s45 = scalar_select %p42, %s43, %s44
    %p48 = pneg %p42
    %p49 = scmp.eq.s32.totalorder %s7, 1
    %p50 = por %p48, %p49
    %p51 = scmp.ne.s32.totalorder %s43, %s46
    %p52 = scmp.eq.s32.totalorder %s7, 0
    %p53 = por %p51, %p52
    %p54 = scmp.ne.s32.totalorder %s43, %s46
    %p55 = scmp.eq.s32.totalorder %s12, 1
    %p56 = por %p54, %p55
    %p57 = scmp.ne.s32.totalorder %s46, %s47
    %p58 = scmp.eq.s32.totalorder %s12, 0
    %p59 = por %p57, %p58
    %p60 = scmp.ne.s32.totalorder %s46, %s47
    %p61 = scmp.eq.s32.totalorder %s13, 1
    %p62 = por %p60, %p61
    %p64 = scmp.ne.s32.totalorder %s47, %s63
    %p65 = scmp.eq.s32.totalorder %s13, 0
    %p66 = por %p64, %p65
    %p67 = scmp.le.s32.totalorder 1, %s7
    %p68 = scmp.lt.s32.totalorder %s7, 3
    %p69 = pnand %p67, %p68
    %p70 = pneg %p69
    // Predicated region
    $region9: #{transformer_forward.48} parent=5 // pred_check
      _
    $region10: #{transformer_forward.48} parent=5 // pred_check_branch
      %72 = sbr.rel (%p69) target = $region12
    $region11: #{transformer_forward.48} parent=5 // pred_region
      %s73 = ssub.s32 %s7, 1
    $region12: #{transformer_forward.48} parent=5 // pred_fallthru
      _
    %p74 = scmp.lt.s32.totalorder %s7, 2
    // Predicated region
    $region13: #{transformer_forward.48} parent=5 // pred_check
      %p75 = pneg %p74
    $region14: #{transformer_forward.48} parent=5 // pred_check_branch
      %77 = sbr.rel (%p75) target = $region16
    $region15: #{transformer_forward.48} parent=5 // pred_region
      // Predicated region
      $region17: #{transformer_forward.48} parent=15 // pred_check
        %p78 = pneg %p27
      $region18: #{transformer_forward.48} parent=15 // pred_check_branch
        %80 = sbr.rel (%p78) target = $region20
      $region19: #{transformer_forward.48} parent=15 // pred_region
        %p81 = scmp.lt.s32.totalorder %s7, 1
        %s82 = scalar_select %p81, %s7, 1
        %s83 = smul.addr %s82, 4
        %s84 = scalar_lea.vmem %s0, %s83
      $region20: #{transformer_forward.48} parent=15 // pred_fallthru
        _
    $region16: #{transformer_forward.48} parent=5 // pred_fallthru
      _
    %p85 = scmp.le.s32.totalorder 1, %s7
    %p86 = scmp.lt.s32.totalorder %s7, 3
    %p87 = pnand %p85, %p86
    %p88 = pneg %p87
    // Predicated region
    $region21: #{transformer_forward.48} parent=5 // pred_check
      _
    $region22: #{transformer_forward.48} parent=5 // pred_check_branch
      %90 = sbr.rel (%p87) target = $region24
    $region23: #{transformer_forward.48} parent=5 // pred_region
      %s91 = ssub.s32 %s7, 1
      %p92 = scmp.lt.s32.totalorder %s12, 1
      %s93 = scalar_select %p92, %s12, 1
      %s94 = smul.addr %s93, 4
      %s95 = scalar_lea.vmem %s0, %s94
      %p96 = pneg %p33
      %p97 = pneg %p30
      %p98 = pneg %p59
      %p99 = pneg %p56
      %p100 = scmp.lt.s32.totalorder %s12, 1
      %s101 = scalar_select %p100, %s12, 1
      %s102 = smul.addr %s101, 4
      %s103 = scalar_lea.vmem %s1, %s102
      %p104 = scmp.lt.s32.totalorder %s12, 1
      %s105 = scalar_select %p104, %s12, 1
      %s106 = smul.addr %s105, 4
      %s107 = scalar_lea.vmem %s0, %s106
      %p108 = scmp.lt.s32.totalorder %s12, 1
      %s109 = scalar_select %p108, %s12, 1
      %s110 = smul.addr %s109, 4
      %s111 = scalar_lea.vmem %s1, %s110
      %v113 = vlaneseq
      %v114 = vshrl.u32 %v113, 7
      %v115 = vlaneseq
      %v116 = vand.u32 %v115, 127
      %vm117 = vcmp.ge.s32.totalorder %v114, %v116
      %v118 = vld [vmem:[%s107] sm:$0xf]
      %v119 = vunpack.c.l.bf16 %v118
      %v120 = vmul.f32 %v119, 0.35355338
      %v121 = vpack.c.bf16 %v120, %v120
      %v123 = vunpack.c.l.b16 %v118
      %v124 = vpack.c.b16 %v123, %v123
      %125 = vrot.lane.b32.xlu0 %v124, 96
      %v126 = vpop.permute.xlu0 %125
      %vm127 = vcmask 64512
      %v129 = vsel %vm127, %v121, 0
      %v132 = vsel %vm127, %v126, 0
      %134 = vmatpush.bf16.xpose.msra.mxu0 0
      %135 = vmatpush.bf16.xpose.msra.mxu0 0
      %136 = vmatpush.bf16.xpose.msra.mxu0 0
      %137 = vmatpush.bf16.xpose.msra.mxu0 0
      %138 = vmatpush.bf16.xpose.msra.mxu0 0
      %139 = vmatpush.bf16.xpose.msra.mxu0 0
      %140 = vmatpush.bf16.xpose.msra.mxu0 0
      %141 = vmatpush.bf16.xpose.msra.mxu0 %v132
      %142 = vmatmul.bf16.gmra.mxu0 %v129
      %v143 = vpop.f32.mrf.mxu0
      %v144 = vadd.f32 0.0, %v143
      %v145 = vpop.f32.mrf.mxu0
      %146 = vdwg.mxu0
      %v147 = vsel %vm117, %v144, -1e+09
      %v148 = vsel %vm127, %v147, -inf
      %149 = vmax.xlane.f32.xlu0 %v148
      %v150 = vpop.xlane.xlu0 %149
      %v151 = vsub.f32 %v147, %v150
      %v152 = vmul.f32 %v151, 1.442695
      %v153 = vpow.pop %v152
      %v154 = vsel %vm127, %v153, 0.0
      %155 = vadd.xlane.f32.xlu0 %v154
      %v156 = vpop.xlane.xlu0 %155
      %v157 = vrcp.pop %v156
      %v158 = vmul.f32 %v153, %v157
      %v159 = vpack.c.bf16 %v158, %v158
      %160 = vrot.lane.b32.xlu0 %v124, 64
      %v161 = vpop.permute.xlu0 %160
      %v163 = vsel %vm127, %v159, 0
      %vm165 = vcmask 1043456
      %v167 = vsel %vm165, %v161, 0
      %169 = vmatpush.bf16.msra.mxu0 0
      %170 = vmatpush.bf16.msra.mxu0 0
      %171 = vmatpush.bf16.msra.mxu0 0
      %172 = vmatpush.bf16.msra.mxu0 0
      %173 = vmatpush.bf16.msra.mxu0 0
      %174 = vmatpush.bf16.msra.mxu0 0
      %175 = vmatpush.bf16.msra.mxu0 0
      %176 = vmatpush.bf16.msra.mxu0 %v167
      %177 = vmatmul.bf16.gmra.mxu0 %v163
      %v178 = vpop.f32.mrf.mxu0
      %v179 = vadd.f32 0.0, %v178
      %v180 = vpop.f32.mrf.mxu0
      %181 = vdwg.mxu0
      %183 = vrot.lane.b32.xlu0 %v121, 120
      %v184 = vpop.permute.xlu0 %183
      %185 = vrot.lane.b32.xlu0 %v124, 88
      %v186 = vpop.permute.xlu0 %185
      %v188 = vsel %vm127, %v184, 0
      %v191 = vsel %vm127, %v186, 0
      %193 = vmatpush.bf16.xpose.msra.mxu0 0
      %194 = vmatpush.bf16.xpose.msra.mxu0 0
      %195 = vmatpush.bf16.xpose.msra.mxu0 0
      %196 = vmatpush.bf16.xpose.msra.mxu0 0
      %197 = vmatpush.bf16.xpose.msra.mxu0 0
      %198 = vmatpush.bf16.xpose.msra.mxu0 0
      %199 = vmatpush.bf16.xpose.msra.mxu0 0
      %200 = vmatpush.bf16.xpose.msra.mxu0 %v191
      %201 = vmatmul.bf16.gmra.mxu0 %v188
      %v202 = vpop.f32.mrf.mxu0
      %v203 = vadd.f32 0.0, %v202
      %v204 = vpop.f32.mrf.mxu0
      %205 = vdwg.mxu0
      %v206 = vsel %vm117, %v203, -1e+09
      %v207 = vsel %vm127, %v206, -inf
      %208 = vmax.xlane.f32.xlu0 %v207
      %v209 = vpop.xlane.xlu0 %208
      %v210 = vsub.f32 %v206, %v209
      %v211 = vmul.f32 %v210, 1.442695
      %v212 = vpow.pop %v211
      %v213 = vsel %vm127, %v212, 0.0
      %214 = vadd.xlane.f32.xlu0 %v213
      %v215 = vpop.xlane.xlu0 %214
      %v216 = vrcp.pop %v215
      %v217 = vmul.f32 %v212, %v216
      %v218 = vpack.c.bf16 %v217, %v217
      %219 = vrot.lane.b32.xlu0 %v124, 56
      %v220 = vpop.permute.xlu0 %219
      %v222 = vsel %vm127, %v218, 0
      %v225 = vsel %vm165, %v220, 0
      %227 = vmatpush.bf16.msra.mxu0 0
      %228 = vmatpush.bf16.msra.mxu0 0
      %229 = vmatpush.bf16.msra.mxu0 0
      %230 = vmatpush.bf16.msra.mxu0 0
      %231 = vmatpush.bf16.msra.mxu0 0
      %232 = vmatpush.bf16.msra.mxu0 0
      %233 = vmatpush.bf16.msra.mxu0 0
      %234 = vmatpush.bf16.msra.mxu0 %v225
      %235 = vmatmul.bf16.gmra.mxu0 %v222
      %v236 = vpop.f32.mrf.mxu0
      %v237 = vadd.f32 0.0, %v236
      %v238 = vpop.f32.mrf.mxu0
      %239 = vdwg.mxu0
      %240 = vrot.lane.b32.xlu0 %v121, 112
      %v241 = vpop.permute.xlu0 %240
      %242 = vrot.lane.b32.xlu0 %v124, 80
      %v243 = vpop.permute.xlu0 %242
      %v245 = vsel %vm127, %v241, 0
      %v248 = vsel %vm127, %v243, 0
      %250 = vmatpush.bf16.xpose.msra.mxu0 0
      %251 = vmatpush.bf16.xpose.msra.mxu0 0
      %252 = vmatpush.bf16.xpose.msra.mxu0 0
      %253 = vmatpush.bf16.xpose.msra.mxu0 0
      %254 = vmatpush.bf16.xpose.msra.mxu0 0
      %255 = vmatpush.bf16.xpose.msra.mxu0 0
      %256 = vmatpush.bf16.xpose.msra.mxu0 0
      %257 = vmatpush.bf16.xpose.msra.mxu0 %v248
      %258 = vmatmul.bf16.gmra.mxu0 %v245
      %v259 = vpop.f32.mrf.mxu0
      %v260 = vadd.f32 0.0, %v259
      %v261 = vpop.f32.mrf.mxu0
      %262 = vdwg.mxu0
      %v263 = vsel %vm117, %v260, -1e+09
      %v264 = vsel %vm127, %v263, -inf
      %265 = vmax.xlane.f32.xlu0 %v264
      %v266 = vpop.xlane.xlu0 %265
      %v267 = vsub.f32 %v263, %v266
      %v268 = vmul.f32 %v267, 1.442695
      %v269 = vpow.pop %v268
      %v270 = vsel %vm127, %v269, 0.0
      %271 = vadd.xlane.f32.xlu0 %v270
      %v272 = vpop.xlane.xlu0 %271
      %v273 = vrcp.pop %v272
      %v274 = vmul.f32 %v269, %v273
      %v275 = vpack.c.bf16 %v274, %v274
      %276 = vrot.lane.b32.xlu0 %v124, 48
      %v277 = vpop.permute.xlu0 %276
      %v279 = vsel %vm127, %v275, 0
      %v282 = vsel %vm165, %v277, 0
      %284 = vmatpush.bf16.msra.mxu0 0
      %285 = vmatpush.bf16.msra.mxu0 0
      %286 = vmatpush.bf16.msra.mxu0 0
      %287 = vmatpush.bf16.msra.mxu0 0
      %288 = vmatpush.bf16.msra.mxu0 0
      %289 = vmatpush.bf16.msra.mxu0 0
      %290 = vmatpush.bf16.msra.mxu0 0
      %291 = vmatpush.bf16.msra.mxu0 %v282
      %292 = vmatmul.bf16.gmra.mxu0 %v279
      %v293 = vpop.f32.mrf.mxu0
      %v294 = vadd.f32 0.0, %v293
      %v295 = vpop.f32.mrf.mxu0
      %296 = vdwg.mxu0
      %297 = vrot.lane.b32.xlu0 %v121, 104
      %v298 = vpop.permute.xlu0 %297
      %299 = vrot.lane.b32.xlu0 %v124, 72
      %v300 = vpop.permute.xlu0 %299
      %v302 = vsel %vm127, %v298, 0
      %v305 = vsel %vm127, %v300, 0
      %307 = vmatpush.bf16.xpose.msra.mxu0 0
      %308 = vmatpush.bf16.xpose.msra.mxu0 0
      %309 = vmatpush.bf16.xpose.msra.mxu0 0
      %310 = vmatpush.bf16.xpose.msra.mxu0 0
      %311 = vmatpush.bf16.xpose.msra.mxu0 0
      %312 = vmatpush.bf16.xpose.msra.mxu0 0
      %313 = vmatpush.bf16.xpose.msra.mxu0 0
      %314 = vmatpush.bf16.xpose.msra.mxu0 %v305
      %315 = vmatmul.bf16.gmra.mxu0 %v302
      %v316 = vpop.f32.mrf.mxu0
      %v317 = vadd.f32 0.0, %v316
      %v318 = vpop.f32.mrf.mxu0
      %319 = vdwg.mxu0
      %v320 = vsel %vm117, %v317, -1e+09
      %v321 = vsel %vm127, %v320, -inf
      %322 = vmax.xlane.f32.xlu0 %v321
      %v323 = vpop.xlane.xlu0 %322
      %v324 = vsub.f32 %v320, %v323
      %v325 = vmul.f32 %v324, 1.442695
      %v326 = vpow.pop %v325
      %v327 = vsel %vm127, %v326, 0.0
      %328 = vadd.xlane.f32.xlu0 %v327
      %v329 = vpop.xlane.xlu0 %328
      %v330 = vrcp.pop %v329
      %v331 = vmul.f32 %v326, %v330
      %v332 = vpack.c.bf16 %v331, %v331
      %333 = vrot.lane.b32.xlu0 %v124, 40
      %v334 = vpop.permute.xlu0 %333
      %v336 = vsel %vm127, %v332, 0
      %v339 = vsel %vm165, %v334, 0
      %341 = vmatpush.bf16.msra.mxu0 0
      %342 = vmatpush.bf16.msra.mxu0 0
      %343 = vmatpush.bf16.msra.mxu0 0
      %344 = vmatpush.bf16.msra.mxu0 0
      %345 = vmatpush.bf16.msra.mxu0 0
      %346 = vmatpush.bf16.msra.mxu0 0
      %347 = vmatpush.bf16.msra.mxu0 0
      %348 = vmatpush.bf16.msra.mxu0 %v339
      %349 = vmatmul.bf16.gmra.mxu0 %v336
      %v350 = vpop.f32.mrf.mxu0
      %v351 = vadd.f32 0.0, %v350
      %v352 = vpop.f32.mrf.mxu0
      %353 = vdwg.mxu0
      %355 = vrot.lane.b32.xlu0 %v237, 8
      %v356 = vpop.permute.xlu0 %355
      %359 = vrot.lane.b32.xlu0 %v294, 16
      %v360 = vpop.permute.xlu0 %359
      %363 = vrot.lane.b32.xlu0 %v351, 24
      %v364 = vpop.permute.xlu0 %363
      %v366 = vsel %vm127, %v179, %v356
      %vm367 = vcmask 130048
      %v368 = vsel %vm367, %v366, %v360
      %vm369 = vcmask 195584
      %v370 = vsel %vm369, %v368, %v364
      %v371 = vpack.c.bf16 %v370, %v370
      %vm372 = vcmask 257024
      %373 = vst.msk [vmem:[%s111] sm:$0xf] %vm372, %v371
      %p374 = scmp.lt.s32.totalorder %s12, 1
      %s375 = scalar_select %p374, %s12, 1
      %s376 = smul.addr %s375, 4
      %s377 = scalar_lea.vmem %s1, %s376
      // Predicated region
      $region25: #{transformer_forward.48} parent=23 // pred_check
        %p378 = pneg %p56
      $region26: #{transformer_forward.48} parent=23 // pred_check_branch
        %380 = sbr.rel (%p378) target = $region28
      $region27: #{transformer_forward.48} parent=23 // pred_region
        _
      $region28: #{transformer_forward.48} parent=23 // pred_fallthru
        _
    $region24: #{transformer_forward.48} parent=5 // pred_fallthru
      _
    %p381 = scmp.le.s32.totalorder 2, %s7
    // Predicated region
    $region29: #{transformer_forward.48} parent=5 // pred_check
      %p382 = pneg %p381
    $region30: #{transformer_forward.48} parent=5 // pred_check_branch
      %384 = sbr.rel (%p382) target = $region32
    $region31: #{transformer_forward.48} parent=5 // pred_region
      %s385 = ssub.s32 %s7, 2
      // Predicated region
      $region33: #{transformer_forward.48} parent=31 // pred_check
        %p386 = pneg %p62
      $region34: #{transformer_forward.48} parent=31 // pred_check_branch
        %388 = sbr.rel (%p386) target = $region36
      $region35: #{transformer_forward.48} parent=31 // pred_region
        %p389 = scmp.lt.s32.totalorder %s13, 1
        %s390 = scalar_select %p389, %s13, 1
        %s391 = smul.addr %s390, 4
        %s392 = scalar_lea.vmem %s1, %s391
      $region36: #{transformer_forward.48} parent=31 // pred_fallthru
        _
    $region32: #{transformer_forward.48} parent=5 // pred_fallthru
      _
  $region6: #{transformer_forward.48} parent=0 // loop_footer
    %s11 = sadd.s32 1, %s7
  $region7: #{transformer_forward.48} parent=0 // loop_footer_branch
    %6 = sbr.rel target = $region3
  $region8: #{transformer_forward.48} parent=0 // loop_exit
    _

// kernel: transformer_forward.69
$region0: #{transformer_forward.69}
  #allocation0 [shape = 'u32[]', space=smem, size = 0x4, offset = 0x4, fixed_abs, tag = 'smem constant byte address 0x4 - core index']
  #allocation1 [shape = 'u32[72,128]{1,0:T(1,128)}', space=vmem, size = 0x9000, scoped, tag = 'internal scratch']
  %s0 = inlined_call_operand.vmem [shape: bf16[16,32], index: 0, kind: input, shape index: {}]
  %s1 = inlined_call_operand.vmem [shape: bf16[32,16], index: 1, kind: input, shape index: {}]
  %s2 = inlined_call_operand.vmem [shape: f32[1,16], index: 2, kind: input, shape index: {}]
  %s3 = inlined_call_operand.hbm [shape: f32[16,16], index: 3, kind: output, shape index: {}]
  %s4 = sld [smem:[#allocation0]]
  $region22: #{transformer_forward.69} parent=0
    _
  %s6 = ssub.s32 1, %s4
  %s7 = scalar_select 0, %s6, %s4
  $region1: #{transformer_forward.69} parent=0
    #allocation2 [shape = 'u8[8192]{0}', space=vmem, size = 0x2000, scoped, tag = 'output window, operand 0, single buffered']
    #allocation3 [shape = 's32[1]{0}', space=sflag, size = 0x4, scoped, tag = 'scoped memory for transformer_forward.69']
    %8 = vsyncpa [#allocation3], 0
    // Predicated region
    $region2: #{transformer_forward.69} parent=1 // pred_check
      _
    $region3: #{transformer_forward.69} parent=1 // pred_check_branch
      %10 = sbr.rel (0) target = $region5
    $region4: #{transformer_forward.69} parent=1 // pred_region
      _
    $region5: #{transformer_forward.69} parent=1 // pred_fallthru
      _
    // Predicated region
    $region6: #{transformer_forward.69} parent=1 // pred_check
      _
    $region7: #{transformer_forward.69} parent=1 // pred_check_branch
      %12 = sbr.rel (0) target = $region9
    $region8: #{transformer_forward.69} parent=1 // pred_region
      _
    $region9: #{transformer_forward.69} parent=1 // pred_fallthru
      _
    // Predicated region
    $region10: #{transformer_forward.69} parent=1 // pred_check
      _
    $region11: #{transformer_forward.69} parent=1 // pred_check_branch
      %14 = sbr.rel (0) target = $region13
    $region12: #{transformer_forward.69} parent=1 // pred_region
      _
    $region13: #{transformer_forward.69} parent=1 // pred_fallthru
      _
    %v16 = vld [vmem:[%s0] sm:$0xf]
    %v17 = vld [vmem:[%s0 + $0x4] sm:$0xf]
    %v18 = vld [vmem:[%s1] sm:$0xf]
    %v19 = vld [vmem:[%s1 + $0x4] sm:$0xf]
    %v20 = vld [vmem:[%s1 + $0x8] sm:$0xf]
    %v21 = vld [vmem:[%s1 + $0xc] sm:$0xf]
    %v22 = vld [vmem:[%s2] sm:$0x1]
    %v24 = vperm.slane %v22, 0
    %v28 = vunpack.c.l.b16 %v16
    %v29 = vunpack.c.l.b16 %v17
    %v30 = vpack.c.b16 %v29, %v28
    %v35 = vunpack.c.l.b16 %v18
    %v36 = vunpack.c.l.b16 %v19
    %v37 = vunpack.c.l.b16 %v20
    %v38 = vunpack.c.l.b16 %v21
    %v39 = vpack.c.b16 %v36, %v35
    %v40 = vpack.c.b16 %v38, %v37
    %vm43 = vcmask 261120
    %v45 = vsel %vm43, %v30, 0
    %47 = vmatpush.bf16.msra.mxu0 0
    %48 = vmatpush.bf16.msra.mxu0 0
    %49 = vmatpush.bf16.msra.mxu0 0
    %50 = vmatpush.bf16.msra.mxu0 0
    %51 = vmatpush.bf16.msra.mxu0 0
    %52 = vmatpush.bf16.msra.mxu0 0
    %53 = vmatpush.bf16.msra.mxu0 %v40
    %54 = vmatpush.bf16.msra.mxu0 %v39
    %55 = vmatmul.bf16.gmra.mxu0 %v45
    %v56 = vpop.f32.mrf.mxu0
    %v57 = vadd.f32 %v24, %v56
    %v58 = vpop.f32.mrf.mxu0
    %v59 = vadd.f32 %v24, %v58
    %60 = vdwg.mxu0
    %vm61 = vcmask 130048
    %62 = vst.msk [vmem:[#allocation2] sm:$0xff] %vm61, %v57
    %63 = vst.msk [vmem:[#allocation2 + $0x8] sm:$0xff] %vm61, %v59
    // Predicated region
    $region14: #{transformer_forward.69} parent=1 // pred_check
      _
    $region15: #{transformer_forward.69} parent=1 // pred_check_branch
      %65 = sbr.rel (0) target = $region17
    $region16: #{transformer_forward.69} parent=1 // pred_region
      %67 = vsyncadd [#allocation3], 0
      %s68 = sshll.u32 [#allocation2], 4
      %s69 = int_to_ptr.vmem [resolvable:$true] %s68
      %s70 = sshll.u32 %s3, 4
      %s71 = int_to_ptr.hbm [resolvable:$true] %s70
      %76 = dma.vmem_to_hbm [thread:$0]  %s69, 256, %s71, [#allocation3], 128, 128, 8
    $region17: #{transformer_forward.69} parent=1 // pred_fallthru
      _
    // Predicated region
    $region18: #{transformer_forward.69} parent=1 // pred_check
      _
    $region19: #{transformer_forward.69} parent=1 // pred_check_branch
      %78 = sbr.rel (0) target = $region21
    $region20: #{transformer_forward.69} parent=1 // pred_region
      %80 = dma.done [#allocation3], 256
    $region21: #{transformer_forward.69} parent=1 // pred_fallthru
      _
    %81 = vsyncpa [#allocation3], 1

// kernel: transformer_forward.53
$region0: #{transformer_forward.53}
  #allocation0 [shape = 'u32[]', space=smem, size = 0x4, offset = 0x4, fixed_abs, tag = 'smem constant byte address 0x4 - core index']
  #allocation1 [shape = 'u32[72,128]{1,0:T(1,128)}', space=vmem, size = 0x9000, scoped, tag = 'internal scratch']
  %s0 = inlined_call_operand.vmem [shape: bf16[2,8,32], index: 0, kind: input, shape index: {}]
  %s1 = inlined_call_operand.vmem [shape: bf16[2,8,64], index: 1, kind: input, shape index: {}]
  %s2 = inlined_call_operand.vmem [shape: bf16[2,8,32], index: 2, kind: output, shape index: {}]
  %s3 = sld [smem:[#allocation0]]
  $region41: #{transformer_forward.53} parent=0
    _
  %s5 = ssub.s32 1, %s3
  %s6 = scalar_select 0, %s5, %s3
  loop: start=0, step=1, limit=4
  $region2: #{transformer_forward.53} parent=0 // loop_pre_header
    _
  $region3: #{transformer_forward.53} parent=0 // loop_header
    %s8 = sphi 0, %s12
    %p9 = scmp.ge.s32.totalorder %s8, 4
    %s18 = sphi 0, %s20
    %s21 = sphi 0, %s18
    %s22 = sphi 0, %s21
    %s38 = sphi 0, %s22
    %s44 = sphi 0, %s46
    %s47 = sphi 0, %s44
    %s48 = sphi 0, %s47
    %s64 = sphi 0, %s48
    %s70 = sphi 0, %s72
    %s73 = sphi 0, %s70
    %s74 = sphi 0, %s73
    %s90 = sphi 0, %s74
  $region4: #{transformer_forward.53} parent=0 // loop_header_branch
    %11 = sbr.rel (%p9) target = $region8
  $region5: #{transformer_forward.53} parent=0 // loop_body
    %s13 = ssub.s32 %s8, 1
    %s14 = ssub.s32 %s8, 2
    %s15 = sadd.s32 %s8, 1
    %s16 = ssub.s32 %s8, %s15
    %p17 = scmp.eq.s32.totalorder %s16, 0
    %s19 = sadd.s32 %s18, 1
    %s20 = scalar_select %p17, %s18, %s19
    %p23 = pneg %p17
    %p24 = scmp.eq.s32.totalorder %s8, 1
    %p25 = por %p23, %p24
    %p26 = scmp.ne.s32.totalorder %s18, %s21
    %p27 = scmp.eq.s32.totalorder %s8, 0
    %p28 = por %p26, %p27
    %p29 = scmp.ne.s32.totalorder %s18, %s21
    %p30 = scmp.eq.s32.totalorder %s13, 1
    %p31 = por %p29, %p30
    %p32 = scmp.ne.s32.totalorder %s21, %s22
    %p33 = scmp.eq.s32.totalorder %s13, 0
    %p34 = por %p32, %p33
    %p35 = scmp.ne.s32.totalorder %s21, %s22
    %p36 = scmp.eq.s32.totalorder %s14, 1
    %p37 = por %p35, %p36
    %p39 = scmp.ne.s32.totalorder %s22, %s38
    %p40 = scmp.eq.s32.totalorder %s14, 0
    %p41 = por %p39, %p40
    %s42 = ssub.s32 %s8, %s15
    %p43 = scmp.eq.s32.totalorder %s42, 0
    %s45 = sadd.s32 %s44, 1
    %s46 = scalar_select %p43, %s44, %s45
    %p49 = pneg %p43
    %p50 = scmp.eq.s32.totalorder %s8, 1
    %p51 = por %p49, %p50
    %p52 = scmp.ne.s32.totalorder %s44, %s47
    %p53 = scmp.eq.s32.totalorder %s8, 0
    %p54 = por %p52, %p53
    %p55 = scmp.ne.s32.totalorder %s44, %s47
    %p56 = scmp.eq.s32.totalorder %s13, 1
    %p57 = por %p55, %p56
    %p58 = scmp.ne.s32.totalorder %s47, %s48
    %p59 = scmp.eq.s32.totalorder %s13, 0
    %p60 = por %p58, %p59
    %p61 = scmp.ne.s32.totalorder %s47, %s48
    %p62 = scmp.eq.s32.totalorder %s14, 1
    %p63 = por %p61, %p62
    %p65 = scmp.ne.s32.totalorder %s48, %s64
    %p66 = scmp.eq.s32.totalorder %s14, 0
    %p67 = por %p65, %p66
    %s68 = ssub.s32 %s8, %s15
    %p69 = scmp.eq.s32.totalorder %s68, 0
    %s71 = sadd.s32 %s70, 1
    %s72 = scalar_select %p69, %s70, %s71
    %p75 = pneg %p69
    %p76 = scmp.eq.s32.totalorder %s8, 1
    %p77 = por %p75, %p76
    %p78 = scmp.ne.s32.totalorder %s70, %s73
    %p79 = scmp.eq.s32.totalorder %s8, 0
    %p80 = por %p78, %p79
    %p81 = scmp.ne.s32.totalorder %s70, %s73
    %p82 = scmp.eq.s32.totalorder %s13, 1
    %p83 = por %p81, %p82
    %p84 = scmp.ne.s32.totalorder %s73, %s74
    %p85 = scmp.eq.s32.totalorder %s13, 0
    %p86 = por %p84, %p85
    %p87 = scmp.ne.s32.totalorder %s73, %s74
    %p88 = scmp.eq.s32.totalorder %s14, 1
    %p89 = por %p87, %p88
    %p91 = scmp.ne.s32.totalorder %s74, %s90
    %p92 = scmp.eq.s32.totalorder %s14, 0
    %p93 = por %p91, %p92
    %p94 = scmp.le.s32.totalorder 1, %s8
    %p95 = scmp.lt.s32.totalorder %s8, 3
    %p96 = pnand %p94, %p95
    %p97 = pneg %p96
    // Predicated region
    $region9: #{transformer_forward.53} parent=5 // pred_check
      _
    $region10: #{transformer_forward.53} parent=5 // pred_check_branch
      %99 = sbr.rel (%p96) target = $region12
    $region11: #{transformer_forward.53} parent=5 // pred_region
      %s100 = ssub.s32 %s8, 1
    $region12: #{transformer_forward.53} parent=5 // pred_fallthru
      _
    %p101 = scmp.lt.s32.totalorder %s8, 2
    // Predicated region
    $region13: #{transformer_forward.53} parent=5 // pred_check
      %p102 = pneg %p101
    $region14: #{transformer_forward.53} parent=5 // pred_check_branch
      %104 = sbr.rel (%p102) target = $region16
    $region15: #{transformer_forward.53} parent=5 // pred_region
      // Predicated region
      $region17: #{transformer_forward.53} parent=15 // pred_check
        %p105 = pneg %p28
      $region18: #{transformer_forward.53} parent=15 // pred_check_branch
        %107 = sbr.rel (%p105) target = $region20
      $region19: #{transformer_forward.53} parent=15 // pred_region
        %p108 = scmp.lt.s32.totalorder %s8, 1
        %s109 = scalar_select %p108, %s8, 1
        %s110 = smul.addr %s109, 4
        %s111 = scalar_lea.vmem %s0, %s110
      $region20: #{transformer_forward.53} parent=15 // pred_fallthru
        _
      // Predicated region
      $region21: #{transformer_forward.53} parent=15 // pred_check
        %p112 = pneg %p54
      $region22: #{transformer_forward.53} parent=15 // pred_check_branch
        %114 = sbr.rel (%p112) target = $region24
      $region23: #{transformer_forward.53} parent=15 // pred_region
        %p115 = scmp.lt.s32.totalorder %s8, 1
        %s116 = scalar_select %p115, %s8, 1
        %s117 = smul.addr %s116, 4
        %s118 = scalar_lea.vmem %s1, %s117
      $region24: #{transformer_forward.53} parent=15 // pred_fallthru
        _
    $region16: #{transformer_forward.53} parent=5 // pred_fallthru
      _
    %p119 = scmp.le.s32.totalorder 1, %s8
    %p120 = scmp.lt.s32.totalorder %s8, 3
    %p121 = pnand %p119, %p120
    %p122 = pneg %p121
    // Predicated region
    $region25: #{transformer_forward.53} parent=5 // pred_check
      _
    $region26: #{transformer_forward.53} parent=5 // pred_check_branch
      %124 = sbr.rel (%p121) target = $region28
    $region27: #{transformer_forward.53} parent=5 // pred_region
      %s125 = ssub.s32 %s8, 1
      %p126 = scmp.lt.s32.totalorder %s13, 1
      %s127 = scalar_select %p126, %s13, 1
      %s128 = smul.addr %s127, 4
      %s129 = scalar_lea.vmem %s0, %s128
      %p130 = pneg %p34
      %p131 = pneg %p31
      %p132 = scmp.lt.s32.totalorder %s13, 1
      %s133 = scalar_select %p132, %s13, 1
      %s134 = smul.addr %s133, 4
      %s135 = scalar_lea.vmem %s1, %s134
      %p136 = pneg %p60
      %p137 = pneg %p57
      %p138 = pneg %p86
      %p139 = pneg %p83
      %p140 = scmp.lt.s32.totalorder %s13, 1
      %s141 = scalar_select %p140, %s13, 1
      %s142 = smul.addr %s141, 4
      %s143 = scalar_lea.vmem %s2, %s142
      %p144 = scmp.lt.s32.totalorder %s13, 1
      %s145 = scalar_select %p144, %s13, 1
      %s146 = smul.addr %s145, 4
      %s147 = scalar_lea.vmem %s0, %s146
      %p148 = scmp.lt.s32.totalorder %s13, 1
      %s149 = scalar_select %p148, %s13, 1
      %s150 = smul.addr %s149, 4
      %s151 = scalar_lea.vmem %s1, %s150
      %p152 = scmp.lt.s32.totalorder %s13, 1
      %s153 = scalar_select %p152, %s13, 1
      %s154 = smul.addr %s153, 4
      %s155 = scalar_lea.vmem %s2, %s154
      %v157 = vld [vmem:[%s147] sm:$0xf]
      %v158 = vunpack.c.l.bf16 %v157
      %v159 = vmul.f32 %v158, 0.35355338
      %v160 = vpack.c.bf16 %v159, %v159
      %v161 = vld [vmem:[%s151] sm:$0xf]
      %vm162 = vcmask 64512
      %v164 = vsel %vm162, %v160, 0
      %v167 = vsel %vm162, %v161, 0
      %169 = vmatpush.bf16.xpose.msra.mxu0 0
      %170 = vmatpush.bf16.xpose.msra.mxu0 0
      %171 = vmatpush.bf16.xpose.msra.mxu0 0
      %172 = vmatpush.bf16.xpose.msra.mxu0 0
      %173 = vmatpush.bf16.xpose.msra.mxu0 0
      %174 = vmatpush.bf16.xpose.msra.mxu0 0
      %175 = vmatpush.bf16.xpose.msra.mxu0 0
      %176 = vmatpush.bf16.xpose.msra.mxu0 %v167
      %177 = vmatmul.bf16.gmra.mxu0 %v164
      %v178 = vpop.f32.mrf.mxu0
      %v179 = vadd.f32 0.0, %v178
      %v180 = vpop.f32.mrf.mxu0
      %181 = vdwg.mxu0
      %v182 = vsel %vm162, %v179, -inf
      %183 = vmax.xlane.f32.xlu0 %v182
      %v184 = vpop.xlane.xlu0 %183
      %v185 = vsub.f32 %v179, %v184
      %v186 = vmul.f32 %v185, 1.442695
      %v187 = vpow.pop %v186
      %v188 = vsel %vm162, %v187, 0.0
      %189 = vadd.xlane.f32.xlu0 %v188
      %v190 = vpop.xlane.xlu0 %189
      %v191 = vrcp.pop %v190
      %v192 = vmul.f32 %v187, %v191
      %v193 = vpack.c.bf16 %v192, %v192
      %v195 = vunpack.c.l.b16 %v161
      %v196 = vpack.c.b16 %v195, %v195
      %197 = vrot.lane.b32.xlu0 %v196, 96
      %v198 = vpop.permute.xlu0 %197
      %v200 = vsel %vm162, %v193, 0
      %vm202 = vcmask 1043456
      %v204 = vsel %vm202, %v198, 0
      %206 = vmatpush.bf16.msra.mxu0 0
      %207 = vmatpush.bf16.msra.mxu0 0
      %208 = vmatpush.bf16.msra.mxu0 0
      %209 = vmatpush.bf16.msra.mxu0 0
      %210 = vmatpush.bf16.msra.mxu0 0
      %211 = vmatpush.bf16.msra.mxu0 0
      %212 = vmatpush.bf16.msra.mxu0 0
      %213 = vmatpush.bf16.msra.mxu0 %v204
      %214 = vmatmul.bf16.gmra.mxu0 %v200
      %v215 = vpop.f32.mrf.mxu0
      %v216 = vadd.f32 0.0, %v215
      %v217 = vpop.f32.mrf.mxu0
      %218 = vdwg.mxu0
      %220 = vrot.lane.b32.xlu0 %v160, 120
      %v221 = vpop.permute.xlu0 %220
      %222 = vrot.lane.b32.xlu0 %v196, 120
      %v223 = vpop.permute.xlu0 %222
      %v225 = vsel %vm162, %v221, 0
      %v228 = vsel %vm162, %v223, 0
      %230 = vmatpush.bf16.xpose.msra.mxu0 0
      %231 = vmatpush.bf16.xpose.msra.mxu0 0
      %232 = vmatpush.bf16.xpose.msra.mxu0 0
      %233 = vmatpush.bf16.xpose.msra.mxu0 0
      %234 = vmatpush.bf16.xpose.msra.mxu0 0
      %235 = vmatpush.bf16.xpose.msra.mxu0 0
      %236 = vmatpush.bf16.xpose.msra.mxu0 0
      %237 = vmatpush.bf16.xpose.msra.mxu0 %v228
      %238 = vmatmul.bf16.gmra.mxu0 %v225
      %v239 = vpop.f32.mrf.mxu0
      %v240 = vadd.f32 0.0, %v239
      %v241 = vpop.f32.mrf.mxu0
      %242 = vdwg.mxu0
      %v243 = vsel %vm162, %v240, -inf
      %244 = vmax.xlane.f32.xlu0 %v243
      %v245 = vpop.xlane.xlu0 %244
      %v246 = vsub.f32 %v240, %v245
      %v247 = vmul.f32 %v246, 1.442695
      %v248 = vpow.pop %v247
      %v249 = vsel %vm162, %v248, 0.0
      %250 = vadd.xlane.f32.xlu0 %v249
      %v251 = vpop.xlane.xlu0 %250
      %v252 = vrcp.pop %v251
      %v253 = vmul.f32 %v248, %v252
      %v254 = vpack.c.bf16 %v253, %v253
      %255 = vrot.lane.b32.xlu0 %v196, 88
      %v256 = vpop.permute.xlu0 %255
      %v258 = vsel %vm162, %v254, 0
      %v261 = vsel %vm202, %v256, 0
      %263 = vmatpush.bf16.msra.mxu0 0
      %264 = vmatpush.bf16.msra.mxu0 0
      %265 = vmatpush.bf16.msra.mxu0 0
      %266 = vmatpush.bf16.msra.mxu0 0
      %267 = vmatpush.bf16.msra.mxu0 0
      %268 = vmatpush.bf16.msra.mxu0 0
      %269 = vmatpush.bf16.msra.mxu0 0
      %270 = vmatpush.bf16.msra.mxu0 %v261
      %271 = vmatmul.bf16.gmra.mxu0 %v258
      %v272 = vpop.f32.mrf.mxu0
      %v273 = vadd.f32 0.0, %v272
      %v274 = vpop.f32.mrf.mxu0
      %275 = vdwg.mxu0
      %276 = vrot.lane.b32.xlu0 %v160, 112
      %v277 = vpop.permute.xlu0 %276
      %278 = vrot.lane.b32.xlu0 %v196, 112
      %v279 = vpop.permute.xlu0 %278
      %v281 = vsel %vm162, %v277, 0
      %v284 = vsel %vm162, %v279, 0
      %286 = vmatpush.bf16.xpose.msra.mxu0 0
      %287 = vmatpush.bf16.xpose.msra.mxu0 0
      %288 = vmatpush.bf16.xpose.msra.mxu0 0
      %289 = vmatpush.bf16.xpose.msra.mxu0 0
      %290 = vmatpush.bf16.xpose.msra.mxu0 0
      %291 = vmatpush.bf16.xpose.msra.mxu0 0
      %292 = vmatpush.bf16.xpose.msra.mxu0 0
      %293 = vmatpush.bf16.xpose.msra.mxu0 %v284
      %294 = vmatmul.bf16.gmra.mxu0 %v281
      %v295 = vpop.f32.mrf.mxu0
      %v296 = vadd.f32 0.0, %v295
      %v297 = vpop.f32.mrf.mxu0
      %298 = vdwg.mxu0
      %v299 = vsel %vm162, %v296, -inf
      %300 = vmax.xlane.f32.xlu0 %v299
      %v301 = vpop.xlane.xlu0 %300
      %v302 = vsub.f32 %v296, %v301
      %v303 = vmul.f32 %v302, 1.442695
      %v304 = vpow.pop %v303
      %v305 = vsel %vm162, %v304, 0.0
      %306 = vadd.xlane.f32.xlu0 %v305
      %v307 = vpop.xlane.xlu0 %306
      %v308 = vrcp.pop %v307
      %v309 = vmul.f32 %v304, %v308
      %v310 = vpack.c.bf16 %v309, %v309
      %311 = vrot.lane.b32.xlu0 %v196, 80
      %v312 = vpop.permute.xlu0 %311
      %v314 = vsel %vm162, %v310, 0
      %v317 = vsel %vm202, %v312, 0
      %319 = vmatpush.bf16.msra.mxu0 0
      %320 = vmatpush.bf16.msra.mxu0 0
      %321 = vmatpush.bf16.msra.mxu0 0
      %322 = vmatpush.bf16.msra.mxu0 0
      %323 = vmatpush.bf16.msra.mxu0 0
      %324 = vmatpush.bf16.msra.mxu0 0
      %325 = vmatpush.bf16.msra.mxu0 0
      %326 = vmatpush.bf16.msra.mxu0 %v317
      %327 = vmatmul.bf16.gmra.mxu0 %v314
      %v328 = vpop.f32.mrf.mxu0
      %v329 = vadd.f32 0.0, %v328
      %v330 = vpop.f32.mrf.mxu0
      %331 = vdwg.mxu0
      %332 = vrot.lane.b32.xlu0 %v160, 104
      %v333 = vpop.permute.xlu0 %332
      %334 = vrot.lane.b32.xlu0 %v196, 104
      %v335 = vpop.permute.xlu0 %334
      %v337 = vsel %vm162, %v333, 0
      %v340 = vsel %vm162, %v335, 0
      %342 = vmatpush.bf16.xpose.msra.mxu0 0
      %343 = vmatpush.bf16.xpose.msra.mxu0 0
      %344 = vmatpush.bf16.xpose.msra.mxu0 0
      %345 = vmatpush.bf16.xpose.msra.mxu0 0
      %346 = vmatpush.bf16.xpose.msra.mxu0 0
      %347 = vmatpush.bf16.xpose.msra.mxu0 0
      %348 = vmatpush.bf16.xpose.msra.mxu0 0
      %349 = vmatpush.bf16.xpose.msra.mxu0 %v340
      %350 = vmatmul.bf16.gmra.mxu0 %v337
      %v351 = vpop.f32.mrf.mxu0
      %v352 = vadd.f32 0.0, %v351
      %v353 = vpop.f32.mrf.mxu0
      %354 = vdwg.mxu0
      %v355 = vsel %vm162, %v352, -inf
      %356 = vmax.xlane.f32.xlu0 %v355
      %v357 = vpop.xlane.xlu0 %356
      %v358 = vsub.f32 %v352, %v357
      %v359 = vmul.f32 %v358, 1.442695
      %v360 = vpow.pop %v359
      %v361 = vsel %vm162, %v360, 0.0
      %362 = vadd.xlane.f32.xlu0 %v361
      %v363 = vpop.xlane.xlu0 %362
      %v364 = vrcp.pop %v363
      %v365 = vmul.f32 %v360, %v364
      %v366 = vpack.c.bf16 %v365, %v365
      %367 = vrot.lane.b32.xlu0 %v196, 72
      %v368 = vpop.permute.xlu0 %367
      %v370 = vsel %vm162, %v366, 0
      %v373 = vsel %vm202, %v368, 0
      %375 = vmatpush.bf16.msra.mxu0 0
      %376 = vmatpush.bf16.msra.mxu0 0
      %377 = vmatpush.bf16.msra.mxu0 0
      %378 = vmatpush.bf16.msra.mxu0 0
      %379 = vmatpush.bf16.msra.mxu0 0
      %380 = vmatpush.bf16.msra.mxu0 0
      %381 = vmatpush.bf16.msra.mxu0 0
      %382 = vmatpush.bf16.msra.mxu0 %v373
      %383 = vmatmul.bf16.gmra.mxu0 %v370
      %v384 = vpop.f32.mrf.mxu0
      %v385 = vadd.f32 0.0, %v384
      %v386 = vpop.f32.mrf.mxu0
      %387 = vdwg.mxu0
      %389 = vrot.lane.b32.xlu0 %v273, 8
      %v390 = vpop.permute.xlu0 %389
      %393 = vrot.lane.b32.xlu0 %v329, 16
      %v394 = vpop.permute.xlu0 %393
      %397 = vrot.lane.b32.xlu0 %v385, 24
      %v398 = vpop.permute.xlu0 %397
      %v400 = vsel %vm162, %v216, %v390
      %vm401 = vcmask 130048
      %v402 = vsel %vm401, %v400, %v394
      %vm403 = vcmask 195584
      %v404 = vsel %vm403, %v402, %v398
      %v405 = vpack.c.bf16 %v404, %v404
      %vm406 = vcmask 257024
      %407 = vst.msk [vmem:[%s155] sm:$0xf] %vm406, %v405
      %p408 = scmp.lt.s32.totalorder %s13, 1
      %s409 = scalar_select %p408, %s13, 1
      %s410 = smul.addr %s409, 4
      %s411 = scalar_lea.vmem %s2, %s410
      // Predicated region
      $region29: #{transformer_forward.53} parent=27 // pred_check
        %p412 = pneg %p83
      $region30: #{transformer_forward.53} parent=27 // pred_check_branch
        %414 = sbr.rel (%p412) target = $region32
      $region31: #{transformer_forward.53} parent=27 // pred_region
        _
      $region32: #{transformer_forward.53} parent=27 // pred_fallthru
        _
    $region28: #{transformer_forward.53} parent=5 // pred_fallthru
      _
    %p415 = scmp.le.s32.totalorder 2, %s8
    // Predicated region
    $region33: #{transformer_forward.53} parent=5 // pred_check
      %p416 = pneg %p415
    $region34: #{transformer_forward.53} parent=5 // pred_check_branch
      %418 = sbr.rel (%p416) target = $region36
    $region35: #{transformer_forward.53} parent=5 // pred_region
      %s419 = ssub.s32 %s8, 2
      // Predicated region
      $region37: #{transformer_forward.53} parent=35 // pred_check
        %p420 = pneg %p89
      $region38: #{transformer_forward.53} parent=35 // pred_check_branch
        %422 = sbr.rel (%p420) target = $region40
      $region39: #{transformer_forward.53} parent=35 // pred_region
        %p423 = scmp.lt.s32.totalorder %s14, 1
        %s424 = scalar_select %p423, %s14, 1
        %s425 = smul.addr %s424, 4
        %s426 = scalar_lea.vmem %s2, %s425
      $region40: #{transformer_forward.53} parent=35 // pred_fallthru
        _
    $region36: #{transformer_forward.53} parent=5 // pred_fallthru
      _
  $region6: #{transformer_forward.53} parent=0 // loop_footer
    %s12 = sadd.s32 1, %s8
  $region7: #{transformer_forward.53} parent=0 // loop_footer_branch
    %7 = sbr.rel target = $region3
  $region8: #{transformer_forward.53} parent=0 // loop_exit
    _

</llo_original>
